<compile_context>
chip_gen: v6e
topology: v6e:2x2x1
jax: 0.10.0
libtpu: 0.0.40
codegen_flags: <defaults>
</compile_context>

<pallas_src>
import functools
import math

import jax
import jax.numpy as jnp
from jax import lax
from jax.experimental import pallas as pl
from jax.experimental.pallas import tpu as pltpu


# ---------------------------------------------------------------------------
# Kernel
# ---------------------------------------------------------------------------

def _mm(a, b):
    """(m, k) @ (k, n) -> (m, n), f32 accumulation on the MXU."""
    return lax.dot_general(a, b, (((1,), (0,)), ((), ())),
                           preferred_element_type=jnp.float32)


def _mm_nt(a, b):
    """(m, k) @ (n, k)^T -> (m, n) without materializing the transpose."""
    return lax.dot_general(a, b, (((1,), (1,)), ((), ())),
                           preferred_element_type=jnp.float32)


def _attention_body(xkv_ref, xq_ref, wkT_ref, wvT_ref, wqT_ref, woT_ref,
                    o_ref, k_scr, v_scr, *, n_heads, approx_recip):
    """One grid step: `block_b` batch rows x `block_q` query rows.

    xkv_ref : (block_b, L, D)       compute-dtype tile (keys/values source)
    xq_ref  : (block_b, block_q, D) compute-dtype tile (query source)
    wkT_ref : (H, D, dh)   pre-transposed, per-head key weights
    wvT_ref : (H, D, dh)   pre-transposed, per-head value weights
    wqT_ref : (H, D, dh)   pre-transposed, per-head query weights (scale folded)
    woT_ref : (H, dh, D)   pre-transposed, per-head output weights (or None)
    o_ref   : (block_b, block_q, D)
    k_scr   : (H, block_b, L, dh)   VMEM scratch -- K reused across q tiles
    v_scr   : (H, block_b, L, dh)   VMEM scratch -- V reused across q tiles
    """
    block_b, L, D = xkv_ref.shape
    block_q = o_ref.shape[1]
    dh = wkT_ref.shape[2]
    cdt = xkv_ref.dtype  # compute dtype (bf16 by default, f32 for verification)

    # ---- K/V projections: once per batch tile (q is the inner grid axis) ----
    @pl.when(pl.program_id(1) == 0)
    def _():
        if block_b == 1 or L % 8 == 0:
            # Flatten (block_b, L) -> one large MXU matmul per head.
            x_flat = xkv_ref[...].reshape(block_b * L, D)
            for h in range(n_heads):                       # static unroll
                k_scr[h] = _mm(x_flat, wkT_ref[h]).astype(cdt).reshape(
                    block_b, L, dh)
                v_scr[h] = _mm(x_flat, wvT_ref[h]).astype(cdt).reshape(
                    block_b, L, dh)
        else:
            for h in range(n_heads):
                for bb in range(block_b):
                    x_b = xkv_ref[bb]                      # (L, D)
                    k_scr[h, bb] = _mm(x_b, wkT_ref[h]).astype(cdt)
                    v_scr[h, bb] = _mm(x_b, wvT_ref[h]).astype(cdt)

    # ---- queries + softmax attention + (decomposed) output projection ------
    flat_q = (block_b == 1) or (block_q % 8 == 0)

    outs = [None] * block_b
    for h in range(n_heads):                               # static unroll
        if flat_q:
            xq_flat = xq_ref[...].reshape(block_b * block_q, D)
            qh_all = _mm(xq_flat, wqT_ref[h]).astype(cdt)  # (bb*bq, dh), scaled
        for bb in range(block_b):                          # static (small)
            if flat_q:
                qh = (qh_all[bb * block_q:(bb + 1) * block_q]
                      if block_b > 1 else qh_all)          # (block_q, dh)
            else:
                qh = _mm(xq_ref[bb], wqT_ref[h]).astype(cdt)

            kh = k_scr[h, bb]                              # (L, dh)
            vh = v_scr[h, bb]                              # (L, dh)

            # Scores + softmax (f32).
            s = _mm_nt(qh, kh)                             # (block_q, L)
            m = jnp.max(s, axis=-1, keepdims=True)
            e = jnp.exp(s - m)
            denom = jnp.sum(e, axis=-1, keepdims=True)
            if approx_recip:
                p = e * pl.reciprocal(denom, approx=True)  # EUP slot
            else:
                p = e / denom

            rh = _mm(p.astype(cdt), vh)                    # (block_q, dh)

            if woT_ref is not None:
                # output_linear decomposed per head:  result @ Wo^T ==
                # sum_h r_h @ Wo^T[h*dh:(h+1)*dh, :]  -> no concatenate needed.
                contrib = _mm(rh.astype(cdt), woT_ref[h])  # (block_q, D)
            else:
                contrib = rh                               # n_heads == 1
            outs[bb] = contrib if outs[bb] is None else outs[bb] + contrib

    for bb in range(block_b):
        o_ref[bb] = outs[bb].astype(o_ref.dtype)


def _make_kernel(*, n_heads, separate_q, has_wo, approx_recip):
    body = functools.partial(_attention_body, n_heads=n_heads,
                             approx_recip=approx_recip)
    if separate_q and has_wo:
        def kernel(xkv, xq, wk, wv, wq, wo, o, kscr, vscr):
            body(xkv, xq, wk, wv, wq, wo, o, kscr, vscr)
    elif separate_q:
        def kernel(xkv, xq, wk, wv, wq, o, kscr, vscr):
            body(xkv, xq, wk, wv, wq, None, o, kscr, vscr)
    elif has_wo:
        def kernel(xkv, wk, wv, wq, wo, o, kscr, vscr):
            body(xkv, xkv, wk, wv, wq, wo, o, kscr, vscr)
    else:
        def kernel(xkv, wk, wv, wq, o, kscr, vscr):
            body(xkv, xkv, wk, wv, wq, None, o, kscr, vscr)
    return kernel


# ---------------------------------------------------------------------------
# Wrapper
# ---------------------------------------------------------------------------

def _pick_block_q(L):
    if L <= 1024:
        return L
    for cand in (512, 256, 128):
        if L % cand == 0:
            return cand
    return L   # TODO(synk): pad ragged sequence lengths instead of full-L tiles


def attention_forward(x, wk, wv, wq, wo=None, *, n_heads,
                      compute_dtype=jnp.bfloat16, block_q=None, block_b=None,
                      approx_recip=True):
    """Forward pass of the PyTorch `Attention` module (learned queries).

    x  : (B, L, D)
    wk, wv, wq, wo : (D, D) nn.Linear weights, (out_features, in_features).
    wo is only used (and only DMA'd) when n_heads > 1.
    """
    B, L, D = x.shape
    assert D % n_heads == 0, "d_model must be divisible by n_heads"
    dh = D // n_heads
    has_wo = n_heads > 1
    if has_wo:
        assert wo is not None, "output_linear weight required when n_heads > 1"

    # ---- one-time host-side weight prep (free, outside the kernel) ----------
    scale = 1.0 / math.sqrt(dh)
    wkT_h = jnp.transpose(wk.T.reshape(D, n_heads, dh), (1, 0, 2)).astype(compute_dtype)
    wvT_h = jnp.transpose(wv.T.reshape(D, n_heads, dh), (1, 0, 2)).astype(compute_dtype)
    wqT_h = jnp.transpose((wq.T * scale).reshape(D, n_heads, dh),
                          (1, 0, 2)).astype(compute_dtype)
    weights = [wkT_h, wvT_h, wqT_h]
    if has_wo:
        weights.append(wo.T.reshape(n_heads, dh, D).astype(compute_dtype))

    x_c = x.astype(compute_dtype)
    itemsize = jnp.dtype(compute_dtype).itemsize

    # ---- tiling --------------------------------------------------------------
    if block_b is None:
        # Tiny problems: fold the whole batch into a single grid step.
        block_b = B if B * L * D * itemsize <= (1 << 20) else 1
    if block_q is None:
        block_q = _pick_block_q(L)
    assert B % block_b == 0, "block_b must divide batch"
    assert L % block_q == 0, "block_q must divide seq len"  # TODO(synk): pad L

    grid = (B // block_b, L // block_q)
    separate_q = grid[1] > 1   # only pass a separate query tile when L is tiled

    in_specs = [pl.BlockSpec((block_b, L, D), lambda b, q: (b, 0, 0))]   # K/V src
    inputs = [x_c]
    if separate_q:
        in_specs.append(pl.BlockSpec((block_b, block_q, D), lambda b, q: (b, q, 0)))
        inputs.append(x_c)
    # Weights: constant block index -> fetched once, resident across grid steps.
    in_specs += [pl.BlockSpec(w.shape, lambda b, q: (0, 0, 0)) for w in weights]
    inputs += weights

    out_spec = pl.BlockSpec((block_b, block_q, D), lambda b, q: (b, q, 0))

    # K/V scratch (per-head slabs), reused across the inner q-tile axis.
    scratch_shapes = [pltpu.VMEM((n_heads, block_b, L, dh), compute_dtype),
                      pltpu.VMEM((n_heads, block_b, L, dh), compute_dtype)]

    kernel = _make_kernel(n_heads=n_heads, separate_q=separate_q,
                          has_wo=has_wo, approx_recip=approx_recip)

    return pl.pallas_call(
        kernel,
        out_shape=jax.ShapeDtypeStruct((B, L, D), x.dtype),
        grid_spec=pltpu.PrefetchScalarGridSpec(
            num_scalar_prefetch=0,
            grid=grid,
            in_specs=in_specs,
            out_specs=out_spec,
            scratch_shapes=scratch_shapes,
        ),
        compiler_params=pltpu.CompilerParams(
            # q axis carries the K/V scratch -> must be sequential ("arbitrary");
            # batch axis is independent -> "parallel" for megacore sharding.
            dimension_semantics=("parallel", "arbitrary"),
        ),
    )(*inputs)


# ---------------------------------------------------------------------------
# Pure-JAX reference (mirror of the PyTorch forward) + test
# ---------------------------------------------------------------------------

def attention_reference(x, wk, wv, wq, wo, *, n_heads):
    B, L, D = x.shape
    dh = D // n_heads
    k = (x @ wk.T).reshape(B, L, n_heads, dh)
    v = (x @ wv.T).reshape(B, L, n_heads, dh)
    q = (x @ wq.T).reshape(B, L, n_heads, dh)
    s = jnp.einsum("blhd,bmhd->bhlm", q, k) / math.sqrt(dh)
    p = jax.nn.softmax(s, axis=-1)
    r = jnp.einsum("bhlm,bmhd->blhd", p, v).reshape(B, L, D)
    if n_heads > 1:
        r = r @ wo.T
    return r


if __name__ == "__main__":
    # Small shapes consistent with the module: batch=2, seq=8, d_model=32, heads=2.
    B, L, D, H = 2, 8, 32, 2

    key = jax.random.PRNGKey(0)
    kx, kk, kv, kq, ko = jax.random.split(key, 5)

    x = jax.random.normal(kx, (B, L, D), dtype=jnp.float32)
    # Mirrors _initialize(): normal(std=0.1) for K/V/Q weights.
    wk = 0.1 * jax.random.normal(kk, (D, D), dtype=jnp.float32)
    wv = 0.1 * jax.random.normal(kv, (D, D), dtype=jnp.float32)
    wq = 0.1 * jax.random.normal(kq, (D, D), dtype=jnp.float32)
    bound = 1.0 / math.sqrt(D)
    wo = jax.random.uniform(ko, (D, D), dtype=jnp.float32,
                            minval=-bound, maxval=bound)

    ref = attention_reference(x, wk, wv, wq, wo, n_heads=H)

    # 1) Structural-correctness check: f32 compute, exact softmax division.
    out_f32 = attention_forward(x, wk, wv, wq, wo, n_heads=H,
                                compute_dtype=jnp.float32, approx_recip=False)
    out_f32 = jax.block_until_ready(out_f32)
    assert out_f32.shape == (B, L, D)
    assert jnp.allclose(out_f32, ref, atol=1e-4, rtol=1e-4), "f32 path mismatch"

    # 2) Optimized path: bf16 operands (f32 accumulation) + approx reciprocal.
    out_bf16 = attention_forward(x, wk, wv, wq, wo, n_heads=H)
    out_bf16 = jax.block_until_ready(out_bf16)
    assert out_bf16.shape == (B, L, D)
    assert jnp.allclose(out_bf16, ref, atol=5e-2, rtol=5e-2), "bf16 path mismatch"

    # 3) Exercise the query-tiled path (K/V scratch reuse across q tiles).
    out_tiled = attention_forward(x, wk, wv, wq, wo, n_heads=H,
                                  compute_dtype=jnp.float32, approx_recip=False,
                                  block_q=L // 2, block_b=1)
    out_tiled = jax.block_until_ready(out_tiled)
    assert jnp.allclose(out_tiled, ref, atol=1e-4, rtol=1e-4), "tiled path mismatch"

    # TODO(synk): mask, attn_weights=True (CPU-normalized weights), and the
    # fixed-queries (n_fixed_queries) branches are not exercised by this kernel.

    print("KERNEL_OK")
</pallas_src>

<mosaic_0001>
module attributes {stable_mosaic.version = 11 : i64} {
  func.func @kernel(%arg0: i32, %arg1: i32, %arg2: memref<2x8x32xf32, #tpu.memory_space<vmem>>, %arg3: memref<2x32x16xf32, #tpu.memory_space<vmem>>, %arg4: memref<2x32x16xf32, #tpu.memory_space<vmem>>, %arg5: memref<2x32x16xf32, #tpu.memory_space<vmem>>, %arg6: memref<2x16x32xf32, #tpu.memory_space<vmem>>, %arg7: memref<2x8x32xf32, #tpu.memory_space<vmem>>, %arg8: memref<2x2x8x16xf32, #tpu.memory_space<vmem>>, %arg9: memref<2x2x8x16xf32, #tpu.memory_space<vmem>>) attributes {dimension_semantics = [#tpu.dimension_semantics<parallel>, #tpu.dimension_semantics<arbitrary>], iteration_bounds = array<i64: 1, 1>, scalar_prefetch = 0 : i64, scratch_operands = 2 : i64, tpu.core_type = #tpu.core_type<tc>, window_params = [{transform_indices = @transform_0, window_bounds = array<i64: 2, 8, 32>}, {pipeline_mode = #tpu.pipeline_mode<synchronous>, transform_indices = @transform_1, window_bounds = array<i64: 2, 32, 16>}, {pipeline_mode = #tpu.pipeline_mode<synchronous>, transform_indices = @transform_2, window_bounds = array<i64: 2, 32, 16>}, {pipeline_mode = #tpu.pipeline_mode<synchronous>, transform_indices = @transform_3, window_bounds = array<i64: 2, 32, 16>}, {pipeline_mode = #tpu.pipeline_mode<synchronous>, transform_indices = @transform_4, window_bounds = array<i64: 2, 16, 32>}, {transform_indices = @transform_5, window_bounds = array<i64: 2, 8, 32>}]} {
    %c0_i32 = arith.constant 0 : i32
    %0 = arith.cmpi eq, %arg1, %c0_i32 : i32
    %1 = arith.extui %0 : i1 to i32
    %c0_i32_0 = arith.constant 0 : i32
    %2 = arith.cmpi ne, %1, %c0_i32_0 : i32
    scf.if %2 {
      %c0_82 = arith.constant 0 : index
      %c0_83 = arith.constant 0 : index
      %c0_84 = arith.constant 0 : index
      %97 = vector.load %arg2[%c0_82, %c0_83, %c0_84] : memref<2x8x32xf32, #tpu.memory_space<vmem>>, vector<2x8x32xf32>
      %98 = vector.shape_cast %97 : vector<2x8x32xf32> to vector<16x32xf32>
      %c0_85 = arith.constant 0 : index
      %c0_86 = arith.constant 0 : index
      %c0_87 = arith.constant 0 : index
      %99 = vector.load %arg3[%c0_85, %c0_86, %c0_87] : memref<2x32x16xf32, #tpu.memory_space<vmem>>, vector<1x32x16xf32>
      %100 = vector.shape_cast %99 : vector<1x32x16xf32> to vector<32x16xf32>
      %cst_88 = arith.constant dense<0.000000e+00> : vector<16x16xf32>
      %101 = tpu.matmul %98, %100, %cst_88 {dimension_numbers = #tpu.dot_dimension_numbers<[1], [0], [0], [1], [0, 0, 1, 1], [], []>} : vector<16x32xf32>, vector<32x16xf32>, vector<16x16xf32> -> vector<16x16xf32>
      %102 = vector.shape_cast %101 : vector<16x16xf32> to vector<2x8x16xf32>
      %c0_89 = arith.constant 0 : index
      %c0_90 = arith.constant 0 : index
      %c0_91 = arith.constant 0 : index
      %c0_92 = arith.constant 0 : index
      %103 = vector.load %arg8[%c0_89, %c0_90, %c0_91, %c0_92] : memref<2x2x8x16xf32, #tpu.memory_space<vmem>>, vector<1x2x8x16xf32>
      %104 = vector.shape_cast %103 : vector<1x2x8x16xf32> to vector<2x8x16xf32>
      %105 = vector.shape_cast %102 : vector<2x8x16xf32> to vector<1x2x8x16xf32>
      tpu.vector_store %arg8[%c0_89, %c0_90, %c0_91, %c0_92], %105 {strides = array<i32>} : memref<2x2x8x16xf32, #tpu.memory_space<vmem>>, vector<1x2x8x16xf32>,
      %c0_93 = arith.constant 0 : index
      %c0_94 = arith.constant 0 : index
      %c0_95 = arith.constant 0 : index
      %106 = vector.load %arg4[%c0_93, %c0_94, %c0_95] : memref<2x32x16xf32, #tpu.memory_space<vmem>>, vector<1x32x16xf32>
      %107 = vector.shape_cast %106 : vector<1x32x16xf32> to vector<32x16xf32>
      %cst_96 = arith.constant dense<0.000000e+00> : vector<16x16xf32>
      %108 = tpu.matmul %98, %107, %cst_96 {dimension_numbers = #tpu.dot_dimension_numbers<[1], [0], [0], [1], [0, 0, 1, 1], [], []>} : vector<16x32xf32>, vector<32x16xf32>, vector<16x16xf32> -> vector<16x16xf32>
      %109 = vector.shape_cast %108 : vector<16x16xf32> to vector<2x8x16xf32>
      %c0_97 = arith.constant 0 : index
      %c0_98 = arith.constant 0 : index
      %c0_99 = arith.constant 0 : index
      %c0_100 = arith.constant 0 : index
      %110 = vector.load %arg9[%c0_97, %c0_98, %c0_99, %c0_100] : memref<2x2x8x16xf32, #tpu.memory_space<vmem>>, vector<1x2x8x16xf32>
      %111 = vector.shape_cast %110 : vector<1x2x8x16xf32> to vector<2x8x16xf32>
      %112 = vector.shape_cast %109 : vector<2x8x16xf32> to vector<1x2x8x16xf32>
      tpu.vector_store %arg9[%c0_97, %c0_98, %c0_99, %c0_100], %112 {strides = array<i32>} : memref<2x2x8x16xf32, #tpu.memory_space<vmem>>, vector<1x2x8x16xf32>,
      %c1_101 = arith.constant 1 : index
      %c0_102 = arith.constant 0 : index
      %c0_103 = arith.constant 0 : index
      %113 = vector.load %arg3[%c1_101, %c0_102, %c0_103] : memref<2x32x16xf32, #tpu.memory_space<vmem>>, vector<1x32x16xf32>
      %114 = vector.shape_cast %113 : vector<1x32x16xf32> to vector<32x16xf32>
      %cst_104 = arith.constant dense<0.000000e+00> : vector<16x16xf32>
      %115 = tpu.matmul %98, %114, %cst_104 {dimension_numbers = #tpu.dot_dimension_numbers<[1], [0], [0], [1], [0, 0, 1, 1], [], []>} : vector<16x32xf32>, vector<32x16xf32>, vector<16x16xf32> -> vector<16x16xf32>
      %116 = vector.shape_cast %115 : vector<16x16xf32> to vector<2x8x16xf32>
      %c1_105 = arith.constant 1 : index
      %c0_106 = arith.constant 0 : index
      %c0_107 = arith.constant 0 : index
      %c0_108 = arith.constant 0 : index
      %117 = vector.load %arg8[%c1_105, %c0_106, %c0_107, %c0_108] : memref<2x2x8x16xf32, #tpu.memory_space<vmem>>, vector<1x2x8x16xf32>
      %118 = vector.shape_cast %117 : vector<1x2x8x16xf32> to vector<2x8x16xf32>
      %119 = vector.shape_cast %116 : vector<2x8x16xf32> to vector<1x2x8x16xf32>
      tpu.vector_store %arg8[%c1_105, %c0_106, %c0_107, %c0_108], %119 {strides = array<i32>} : memref<2x2x8x16xf32, #tpu.memory_space<vmem>>, vector<1x2x8x16xf32>,
      %c1_109 = arith.constant 1 : index
      %c0_110 = arith.constant 0 : index
      %c0_111 = arith.constant 0 : index
      %120 = vector.load %arg4[%c1_109, %c0_110, %c0_111] : memref<2x32x16xf32, #tpu.memory_space<vmem>>, vector<1x32x16xf32>
      %121 = vector.shape_cast %120 : vector<1x32x16xf32> to vector<32x16xf32>
      %cst_112 = arith.constant dense<0.000000e+00> : vector<16x16xf32>
      %122 = tpu.matmul %98, %121, %cst_112 {dimension_numbers = #tpu.dot_dimension_numbers<[1], [0], [0], [1], [0, 0, 1, 1], [], []>} : vector<16x32xf32>, vector<32x16xf32>, vector<16x16xf32> -> vector<16x16xf32>
      %123 = vector.shape_cast %122 : vector<16x16xf32> to vector<2x8x16xf32>
      %c1_113 = arith.constant 1 : index
      %c0_114 = arith.constant 0 : index
      %c0_115 = arith.constant 0 : index
      %c0_116 = arith.constant 0 : index
      %124 = vector.load %arg9[%c1_113, %c0_114, %c0_115, %c0_116] : memref<2x2x8x16xf32, #tpu.memory_space<vmem>>, vector<1x2x8x16xf32>
      %125 = vector.shape_cast %124 : vector<1x2x8x16xf32> to vector<2x8x16xf32>
      %126 = vector.shape_cast %123 : vector<2x8x16xf32> to vector<1x2x8x16xf32>
      tpu.vector_store %arg9[%c1_113, %c0_114, %c0_115, %c0_116], %126 {strides = array<i32>} : memref<2x2x8x16xf32, #tpu.memory_space<vmem>>, vector<1x2x8x16xf32>,
    } else {
    }
    %c0 = arith.constant 0 : index
    %c0_1 = arith.constant 0 : index
    %c0_2 = arith.constant 0 : index
    %3 = vector.load %arg2[%c0, %c0_1, %c0_2] : memref<2x8x32xf32, #tpu.memory_space<vmem>>, vector<2x8x32xf32>
    %4 = vector.shape_cast %3 : vector<2x8x32xf32> to vector<16x32xf32>
    %c0_3 = arith.constant 0 : index
    %c0_4 = arith.constant 0 : index
    %c0_5 = arith.constant 0 : index
    %5 = vector.load %arg5[%c0_3, %c0_4, %c0_5] : memref<2x32x16xf32, #tpu.memory_space<vmem>>, vector<1x32x16xf32>
    %6 = vector.shape_cast %5 : vector<1x32x16xf32> to vector<32x16xf32>
    %cst = arith.constant dense<0.000000e+00> : vector<16x16xf32>
    %7 = tpu.matmul %4, %6, %cst {dimension_numbers = #tpu.dot_dimension_numbers<[1], [0], [0], [1], [0, 0, 1, 1], [], []>} : vector<16x32xf32>, vector<32x16xf32>, vector<16x16xf32> -> vector<16x16xf32>
    %8 = vector.extract_strided_slice %7 {offsets = [0, 0], sizes = [8, 16], strides = [1, 1]} : vector<16x16xf32> to vector<8x16xf32>
    %c0_6 = arith.constant 0 : index
    %c0_7 = arith.constant 0 : index
    %c0_8 = arith.constant 0 : index
    %c0_9 = arith.constant 0 : index
    %9 = vector.load %arg8[%c0_6, %c0_7, %c0_8, %c0_9] : memref<2x2x8x16xf32, #tpu.memory_space<vmem>>, vector<1x1x8x16xf32>
    %10 = vector.shape_cast %9 : vector<1x1x8x16xf32> to vector<8x16xf32>
    %c0_10 = arith.constant 0 : index
    %c0_11 = arith.constant 0 : index
    %c0_12 = arith.constant 0 : index
    %c0_13 = arith.constant 0 : index
    %11 = vector.load %arg9[%c0_10, %c0_11, %c0_12, %c0_13] : memref<2x2x8x16xf32, #tpu.memory_space<vmem>>, vector<1x1x8x16xf32>
    %12 = vector.shape_cast %11 : vector<1x1x8x16xf32> to vector<8x16xf32>
    %cst_14 = arith.constant dense<0.000000e+00> : vector<8x8xf32>
    %13 = tpu.matmul %8, %10, %cst_14 {dimension_numbers = #tpu.dot_dimension_numbers<[1], [1], [0], [0], [0, 0, 1, 0], [], []>} : vector<8x16xf32>, vector<8x16xf32>, vector<8x8xf32> -> vector<8x8xf32>
    %cst_15 = arith.constant dense<0xFF800000> : vector<8xf32>
    %14 = vector.multi_reduction <maximumf>, %13, %cst_15 [1] : vector<8x8xf32> to vector<8xf32>
    %15 = vector.shape_cast %14 : vector<8xf32> to vector<8x1xf32>
    %16 = vector.broadcast %15 : vector<8x1xf32> to vector<8x8xf32>
    %17 = arith.subf %13, %16 : vector<8x8xf32>
    %18 = math.exp %17 : vector<8x8xf32>
    %cst_16 = arith.constant dense<0.000000e+00> : vector<8xf32>
    %19 = vector.multi_reduction <add>, %18, %cst_16 [1] : vector<8x8xf32> to vector<8xf32>
    %20 = vector.shape_cast %19 : vector<8xf32> to vector<8x1xf32>
    %21 = vector.broadcast %20 : vector<8x1xf32> to vector<8x8xf32>
    %22 = arith.divf %18, %21 : vector<8x8xf32>
    %cst_17 = arith.constant dense<0.000000e+00> : vector<8x16xf32>
    %23 = tpu.matmul %22, %12, %cst_17 {dimension_numbers = #tpu.dot_dimension_numbers<[1], [0], [0], [1], [0, 0, 1, 1], [], []>} : vector<8x8xf32>, vector<8x16xf32>, vector<8x16xf32> -> vector<8x16xf32>
    %c0_18 = arith.constant 0 : index
    %c0_19 = arith.constant 0 : index
    %c0_20 = arith.constant 0 : index
    %24 = vector.load %arg6[%c0_18, %c0_19, %c0_20] : memref<2x16x32xf32, #tpu.memory_space<vmem>>, vector<1x16x32xf32>
    %25 = vector.shape_cast %24 : vector<1x16x32xf32> to vector<16x32xf32>
    %cst_21 = arith.constant dense<0.000000e+00> : vector<8x32xf32>
    %26 = tpu.matmul %23, %25, %cst_21 {dimension_numbers = #tpu.dot_dimension_numbers<[1], [0], [0], [1], [0, 0, 1, 1], [], []>} : vector<8x16xf32>, vector<16x32xf32>, vector<8x32xf32> -> vector<8x32xf32>
    %27 = vector.extract_strided_slice %7 {offsets = [8, 0], sizes = [8, 16], strides = [1, 1]} : vector<16x16xf32> to vector<8x16xf32>
    %c0_22 = arith.constant 0 : index
    %c1 = arith.constant 1 : index
    %c0_23 = arith.constant 0 : index
    %c0_24 = arith.constant 0 : index
    %28 = vector.load %arg8[%c0_22, %c1, %c0_23, %c0_24] : memref<2x2x8x16xf32, #tpu.memory_space<vmem>>, vector<1x1x8x16xf32>
    %29 = vector.shape_cast %28 : vector<1x1x8x16xf32> to vector<8x16xf32>
    %c0_25 = arith.constant 0 : index
    %c1_26 = arith.constant 1 : index
    %c0_27 = arith.constant 0 : index
    %c0_28 = arith.constant 0 : index
    %30 = vector.load %arg9[%c0_25, %c1_26, %c0_27, %c0_28] : memref<2x2x8x16xf32, #tpu.memory_space<vmem>>, vector<1x1x8x16xf32>
    %31 = vector.shape_cast %30 : vector<1x1x8x16xf32> to vector<8x16xf32>
    %cst_29 = arith.constant dense<0.000000e+00> : vector<8x8xf32>
    %32 = tpu.matmul %27, %29, %cst_29 {dimension_numbers = #tpu.dot_dimension_numbers<[1], [1], [0], [0], [0, 0, 1, 0], [], []>} : vector<8x16xf32>, vector<8x16xf32>, vector<8x8xf32> -> vector<8x8xf32>
    %cst_30 = arith.constant dense<0xFF800000> : vector<8xf32>
    %33 = vector.multi_reduction <maximumf>, %32, %cst_30 [1] : vector<8x8xf32> to vector<8xf32>
    %34 = vector.shape_cast %33 : vector<8xf32> to vector<8x1xf32>
    %35 = vector.broadcast %34 : vector<8x1xf32> to vector<8x8xf32>
    %36 = arith.subf %32, %35 : vector<8x8xf32>
    %37 = math.exp %36 : vector<8x8xf32>
    %cst_31 = arith.constant dense<0.000000e+00> : vector<8xf32>
    %38 = vector.multi_reduction <add>, %37, %cst_31 [1] : vector<8x8xf32> to vector<8xf32>
    %39 = vector.shape_cast %38 : vector<8xf32> to vector<8x1xf32>
    %40 = vector.broadcast %39 : vector<8x1xf32> to vector<8x8xf32>
    %41 = arith.divf %37, %40 : vector<8x8xf32>
    %cst_32 = arith.constant dense<0.000000e+00> : vector<8x16xf32>
    %42 = tpu.matmul %41, %31, %cst_32 {dimension_numbers = #tpu.dot_dimension_numbers<[1], [0], [0], [1], [0, 0, 1, 1], [], []>} : vector<8x8xf32>, vector<8x16xf32>, vector<8x16xf32> -> vector<8x16xf32>
    %c0_33 = arith.constant 0 : index
    %c0_34 = arith.constant 0 : index
    %c0_35 = arith.constant 0 : index
    %43 = vector.load %arg6[%c0_33, %c0_34, %c0_35] : memref<2x16x32xf32, #tpu.memory_space<vmem>>, vector<1x16x32xf32>
    %44 = vector.shape_cast %43 : vector<1x16x32xf32> to vector<16x32xf32>
    %cst_36 = arith.constant dense<0.000000e+00> : vector<8x32xf32>
    %45 = tpu.matmul %42, %44, %cst_36 {dimension_numbers = #tpu.dot_dimension_numbers<[1], [0], [0], [1], [0, 0, 1, 1], [], []>} : vector<8x16xf32>, vector<16x32xf32>, vector<8x32xf32> -> vector<8x32xf32>
    %c0_37 = arith.constant 0 : index
    %c0_38 = arith.constant 0 : index
    %c0_39 = arith.constant 0 : index
    %46 = vector.load %arg2[%c0_37, %c0_38, %c0_39] : memref<2x8x32xf32, #tpu.memory_space<vmem>>, vector<2x8x32xf32>
    %47 = vector.shape_cast %46 : vector<2x8x32xf32> to vector<16x32xf32>
    %c1_40 = arith.constant 1 : index
    %c0_41 = arith.constant 0 : index
    %c0_42 = arith.constant 0 : index
    %48 = vector.load %arg5[%c1_40, %c0_41, %c0_42] : memref<2x32x16xf32, #tpu.memory_space<vmem>>, vector<1x32x16xf32>
    %49 = vector.shape_cast %48 : vector<1x32x16xf32> to vector<32x16xf32>
    %cst_43 = arith.constant dense<0.000000e+00> : vector<16x16xf32>
    %50 = tpu.matmul %47, %49, %cst_43 {dimension_numbers = #tpu.dot_dimension_numbers<[1], [0], [0], [1], [0, 0, 1, 1], [], []>} : vector<16x32xf32>, vector<32x16xf32>, vector<16x16xf32> -> vector<16x16xf32>
    %51 = vector.extract_strided_slice %50 {offsets = [0, 0], sizes = [8, 16], strides = [1, 1]} : vector<16x16xf32> to vector<8x16xf32>
    %c1_44 = arith.constant 1 : index
    %c0_45 = arith.constant 0 : index
    %c0_46 = arith.constant 0 : index
    %c0_47 = arith.constant 0 : index
    %52 = vector.load %arg8[%c1_44, %c0_45, %c0_46, %c0_47] : memref<2x2x8x16xf32, #tpu.memory_space<vmem>>, vector<1x1x8x16xf32>
    %53 = vector.shape_cast %52 : vector<1x1x8x16xf32> to vector<8x16xf32>
    %c1_48 = arith.constant 1 : index
    %c0_49 = arith.constant 0 : index
    %c0_50 = arith.constant 0 : index
    %c0_51 = arith.constant 0 : index
    %54 = vector.load %arg9[%c1_48, %c0_49, %c0_50, %c0_51] : memref<2x2x8x16xf32, #tpu.memory_space<vmem>>, vector<1x1x8x16xf32>
    %55 = vector.shape_cast %54 : vector<1x1x8x16xf32> to vector<8x16xf32>
    %cst_52 = arith.constant dense<0.000000e+00> : vector<8x8xf32>
    %56 = tpu.matmul %51, %53, %cst_52 {dimension_numbers = #tpu.dot_dimension_numbers<[1], [1], [0], [0], [0, 0, 1, 0], [], []>} : vector<8x16xf32>, vector<8x16xf32>, vector<8x8xf32> -> vector<8x8xf32>
    %cst_53 = arith.constant dense<0xFF800000> : vector<8xf32>
    %57 = vector.multi_reduction <maximumf>, %56, %cst_53 [1] : vector<8x8xf32> to vector<8xf32>
    %58 = vector.shape_cast %57 : vector<8xf32> to vector<8x1xf32>
    %59 = vector.broadcast %58 : vector<8x1xf32> to vector<8x8xf32>
    %60 = arith.subf %56, %59 : vector<8x8xf32>
    %61 = math.exp %60 : vector<8x8xf32>
    %cst_54 = arith.constant dense<0.000000e+00> : vector<8xf32>
    %62 = vector.multi_reduction <add>, %61, %cst_54 [1] : vector<8x8xf32> to vector<8xf32>
    %63 = vector.shape_cast %62 : vector<8xf32> to vector<8x1xf32>
    %64 = vector.broadcast %63 : vector<8x1xf32> to vector<8x8xf32>
    %65 = arith.divf %61, %64 : vector<8x8xf32>
    %cst_55 = arith.constant dense<0.000000e+00> : vector<8x16xf32>
    %66 = tpu.matmul %65, %55, %cst_55 {dimension_numbers = #tpu.dot_dimension_numbers<[1], [0], [0], [1], [0, 0, 1, 1], [], []>} : vector<8x8xf32>, vector<8x16xf32>, vector<8x16xf32> -> vector<8x16xf32>
    %c1_56 = arith.constant 1 : index
    %c0_57 = arith.constant 0 : index
    %c0_58 = arith.constant 0 : index
    %67 = vector.load %arg6[%c1_56, %c0_57, %c0_58] : memref<2x16x32xf32, #tpu.memory_space<vmem>>, vector<1x16x32xf32>
    %68 = vector.shape_cast %67 : vector<1x16x32xf32> to vector<16x32xf32>
    %cst_59 = arith.constant dense<0.000000e+00> : vector<8x32xf32>
    %69 = tpu.matmul %66, %68, %cst_59 {dimension_numbers = #tpu.dot_dimension_numbers<[1], [0], [0], [1], [0, 0, 1, 1], [], []>} : vector<8x16xf32>, vector<16x32xf32>, vector<8x32xf32> -> vector<8x32xf32>
    %70 = arith.addf %26, %69 : vector<8x32xf32>
    %71 = vector.extract_strided_slice %50 {offsets = [8, 0], sizes = [8, 16], strides = [1, 1]} : vector<16x16xf32> to vector<8x16xf32>
    %c1_60 = arith.constant 1 : index
    %c1_61 = arith.constant 1 : index
    %c0_62 = arith.constant 0 : index
    %c0_63 = arith.constant 0 : index
    %72 = vector.load %arg8[%c1_60, %c1_61, %c0_62, %c0_63] : memref<2x2x8x16xf32, #tpu.memory_space<vmem>>, vector<1x1x8x16xf32>
    %73 = vector.shape_cast %72 : vector<1x1x8x16xf32> to vector<8x16xf32>
    %c1_64 = arith.constant 1 : index
    %c1_65 = arith.constant 1 : index
    %c0_66 = arith.constant 0 : index
    %c0_67 = arith.constant 0 : index
    %74 = vector.load %arg9[%c1_64, %c1_65, %c0_66, %c0_67] : memref<2x2x8x16xf32, #tpu.memory_space<vmem>>, vector<1x1x8x16xf32>
    %75 = vector.shape_cast %74 : vector<1x1x8x16xf32> to vector<8x16xf32>
    %cst_68 = arith.constant dense<0.000000e+00> : vector<8x8xf32>
    %76 = tpu.matmul %71, %73, %cst_68 {dimension_numbers = #tpu.dot_dimension_numbers<[1], [1], [0], [0], [0, 0, 1, 0], [], []>} : vector<8x16xf32>, vector<8x16xf32>, vector<8x8xf32> -> vector<8x8xf32>
    %cst_69 = arith.constant dense<0xFF800000> : vector<8xf32>
    %77 = vector.multi_reduction <maximumf>, %76, %cst_69 [1] : vector<8x8xf32> to vector<8xf32>
    %78 = vector.shape_cast %77 : vector<8xf32> to vector<8x1xf32>
    %79 = vector.broadcast %78 : vector<8x1xf32> to vector<8x8xf32>
    %80 = arith.subf %76, %79 : vector<8x8xf32>
    %81 = math.exp %80 : vector<8x8xf32>
    %cst_70 = arith.constant dense<0.000000e+00> : vector<8xf32>
    %82 = vector.multi_reduction <add>, %81, %cst_70 [1] : vector<8x8xf32> to vector<8xf32>
    %83 = vector.shape_cast %82 : vector<8xf32> to vector<8x1xf32>
    %84 = vector.broadcast %83 : vector<8x1xf32> to vector<8x8xf32>
    %85 = arith.divf %81, %84 : vector<8x8xf32>
    %cst_71 = arith.constant dense<0.000000e+00> : vector<8x16xf32>
    %86 = tpu.matmul %85, %75, %cst_71 {dimension_numbers = #tpu.dot_dimension_numbers<[1], [0], [0], [1], [0, 0, 1, 1], [], []>} : vector<8x8xf32>, vector<8x16xf32>, vector<8x16xf32> -> vector<8x16xf32>
    %c1_72 = arith.constant 1 : index
    %c0_73 = arith.constant 0 : index
    %c0_74 = arith.constant 0 : index
    %87 = vector.load %arg6[%c1_72, %c0_73, %c0_74] : memref<2x16x32xf32, #tpu.memory_space<vmem>>, vector<1x16x32xf32>
    %88 = vector.shape_cast %87 : vector<1x16x32xf32> to vector<16x32xf32>
    %cst_75 = arith.constant dense<0.000000e+00> : vector<8x32xf32>
    %89 = tpu.matmul %86, %88, %cst_75 {dimension_numbers = #tpu.dot_dimension_numbers<[1], [0], [0], [1], [0, 0, 1, 1], [], []>} : vector<8x16xf32>, vector<16x32xf32>, vector<8x32xf32> -> vector<8x32xf32>
    %90 = arith.addf %45, %89 : vector<8x32xf32>
    %c0_76 = arith.constant 0 : index
    %c0_77 = arith.constant 0 : index
    %c0_78 = arith.constant 0 : index
    %91 = vector.load %arg7[%c0_76, %c0_77, %c0_78] : memref<2x8x32xf32, #tpu.memory_space<vmem>>, vector<1x8x32xf32>
    %92 = vector.shape_cast %91 : vector<1x8x32xf32> to vector<8x32xf32>
    %93 = vector.shape_cast %70 : vector<8x32xf32> to vector<1x8x32xf32>
    tpu.vector_store %arg7[%c0_76, %c0_77, %c0_78], %93 {strides = array<i32>} : memref<2x8x32xf32, #tpu.memory_space<vmem>>, vector<1x8x32xf32>,
    %c1_79 = arith.constant 1 : index
    %c0_80 = arith.constant 0 : index
    %c0_81 = arith.constant 0 : index
    %94 = vector.load %arg7[%c1_79, %c0_80, %c0_81] : memref<2x8x32xf32, #tpu.memory_space<vmem>>, vector<1x8x32xf32>
    %95 = vector.shape_cast %94 : vector<1x8x32xf32> to vector<8x32xf32>
    %96 = vector.shape_cast %90 : vector<8x32xf32> to vector<1x8x32xf32>
    tpu.vector_store %arg7[%c1_79, %c0_80, %c0_81], %96 {strides = array<i32>} : memref<2x8x32xf32, #tpu.memory_space<vmem>>, vector<1x8x32xf32>,
    return
  }
  func.func @transform_0(%arg0: i32, %arg1: i32) -> (i32, i32, i32) {
    %c0_i32 = arith.constant 0 : i32
    %c0_i32_0 = arith.constant 0 : i32
    %c0_i32_1 = arith.constant 0 : i32
    return %arg0, %c0_i32, %c0_i32_0 : i32, i32, i32
  }
  func.func @transform_1(%arg0: i32, %arg1: i32) -> (i32, i32, i32) {
    %c0_i32 = arith.constant 0 : i32
    %c0_i32_0 = arith.constant 0 : i32
    %c0_i32_1 = arith.constant 0 : i32
    %c0_i32_2 = arith.constant 0 : i32
    return %c0_i32, %c0_i32_0, %c0_i32_1 : i32, i32, i32
  }
  func.func @transform_2(%arg0: i32, %arg1: i32) -> (i32, i32, i32) {
    %c0_i32 = arith.constant 0 : i32
    %c0_i32_0 = arith.constant 0 : i32
    %c0_i32_1 = arith.constant 0 : i32
    %c0_i32_2 = arith.constant 0 : i32
    return %c0_i32, %c0_i32_0, %c0_i32_1 : i32, i32, i32
  }
  func.func @transform_3(%arg0: i32, %arg1: i32) -> (i32, i32, i32) {
    %c0_i32 = arith.constant 0 : i32
    %c0_i32_0 = arith.constant 0 : i32
    %c0_i32_1 = arith.constant 0 : i32
    %c0_i32_2 = arith.constant 0 : i32
    return %c0_i32, %c0_i32_0, %c0_i32_1 : i32, i32, i32
  }
  func.func @transform_4(%arg0: i32, %arg1: i32) -> (i32, i32, i32) {
    %c0_i32 = arith.constant 0 : i32
    %c0_i32_0 = arith.constant 0 : i32
    %c0_i32_1 = arith.constant 0 : i32
    %c0_i32_2 = arith.constant 0 : i32
    return %c0_i32, %c0_i32_0, %c0_i32_1 : i32, i32, i32
  }
  func.func @transform_5(%arg0: i32, %arg1: i32) -> (i32, i32, i32) {
    %c0_i32 = arith.constant 0 : i32
    %c0_i32_0 = arith.constant 0 : i32
    return %arg0, %arg1, %c0_i32 : i32, i32, i32
  }
}

</mosaic_0001>

<llo_original>
// kernel: tpu_custom_call.1
$region0: #{tpu_custom_call.1}
  #allocation0 [shape = 'u32[]', space=smem, size = 0x4, offset = 0x4, fixed_abs, tag = 'smem constant byte address 0x4 - core index']
  #allocation1 [shape = 'u32[144,128]{1,0:T(1,128)}', space=vmem, size = 0x12000, scoped, tag = 'internal scratch']
  #allocation2 [shape = 'f32[2,2,8,16]{3,2,1,0:T(8,128)}', space=vmem, size = 0x4000, scoped, tag = 'scratch operand']
  #allocation3 [shape = 'f32[2,2,8,16]{3,2,1,0:T(8,128)}', space=vmem, size = 0x4000, scoped, tag = 'scratch operand']
  %s0 = inlined_call_operand.vmem [shape: f32[2,8,32], index: 0, kind: input, shape index: {}]
  %s1 = inlined_call_operand.vmem [shape: f32[2,32,16], index: 1, kind: input, shape index: {}]
  %s2 = inlined_call_operand.vmem [shape: f32[2,32,16], index: 2, kind: input, shape index: {}]
  %s3 = inlined_call_operand.vmem [shape: f32[2,32,16], index: 3, kind: input, shape index: {}]
  %s4 = inlined_call_operand.vmem [shape: f32[2,16,32], index: 4, kind: input, shape index: {}]
  %s5 = inlined_call_operand.hbm [shape: f32[2,8,32], index: 5, kind: output, shape index: {}]
  %s6 = sld [smem:[#allocation0]]
  $region34: #{tpu_custom_call.1} parent=0
    _
  %s8 = ssub.s32 1, %s6
  %s9 = scalar_select 0, %s8, %s6
  $region1: #{tpu_custom_call.1} parent=0
    #allocation4 [shape = 'u8[8192]{0}', space=vmem, size = 0x2000, scoped, tag = 'output window, operand 0, single buffered']
    #allocation5 [shape = 's32[1]{0}', space=sflag, size = 0x4, scoped, tag = 'scoped memory for tpu_custom_call.1']
    %10 = vsyncpa [#allocation5], 0
    // Predicated region
    $region2: #{tpu_custom_call.1} parent=1 // pred_check
      _
    $region3: #{tpu_custom_call.1} parent=1 // pred_check_branch
      %12 = sbr.rel (0) target = $region5
    $region4: #{tpu_custom_call.1} parent=1 // pred_region
      _
    $region5: #{tpu_custom_call.1} parent=1 // pred_fallthru
      _
    // Predicated region
    $region6: #{tpu_custom_call.1} parent=1 // pred_check
      _
    $region7: #{tpu_custom_call.1} parent=1 // pred_check_branch
      %14 = sbr.rel (0) target = $region9
    $region8: #{tpu_custom_call.1} parent=1 // pred_region
      _
    $region9: #{tpu_custom_call.1} parent=1 // pred_fallthru
      _
    // Predicated region
    $region10: #{tpu_custom_call.1} parent=1 // pred_check
      _
    $region11: #{tpu_custom_call.1} parent=1 // pred_check_branch
      %16 = sbr.rel (0) target = $region13
    $region12: #{tpu_custom_call.1} parent=1 // pred_region
      _
    $region13: #{tpu_custom_call.1} parent=1 // pred_fallthru
      _
    // Predicated region
    $region14: #{tpu_custom_call.1} parent=1 // pred_check
      _
    $region15: #{tpu_custom_call.1} parent=1 // pred_check_branch
      %18 = sbr.rel (0) target = $region17
    $region16: #{tpu_custom_call.1} parent=1 // pred_region
      _
    $region17: #{tpu_custom_call.1} parent=1 // pred_fallthru
      _
    // Predicated region
    $region18: #{tpu_custom_call.1} parent=1 // pred_check
      _
    $region19: #{tpu_custom_call.1} parent=1 // pred_check_branch
      %20 = sbr.rel (0) target = $region21
    $region20: #{tpu_custom_call.1} parent=1 // pred_region
      _
    $region21: #{tpu_custom_call.1} parent=1 // pred_fallthru
      _
    %p21 = scmp.eq.s32.totalorder 0, 0
    // Predicated region
    $region22: #{tpu_custom_call.1} parent=1 // pred_check
      %p22 = pneg %p21
    $region23: #{tpu_custom_call.1} parent=1 // pred_check_branch
      %24 = sbr.rel (%p22) target = $region25
    $region24: #{tpu_custom_call.1} parent=1 // pred_region
      %v25 = vld [vmem:[%s0] sm:$0xff]
      %v26 = vld [vmem:[%s0 + $0x8] sm:$0xff]
      %v27 = vld [vmem:[%s1] sm:$0xff]
      %v28 = vld [vmem:[%s1 + $0x8] sm:$0xff]
      %v29 = vld [vmem:[%s1 + $0x10] sm:$0xff]
      %v30 = vld [vmem:[%s1 + $0x18] sm:$0xff]
      %vm31 = vcmask 261120
      %v33 = vsel %vm31, %v25, 0
      %v36 = vsel %vm31, %v26, 0
      %38 = vmatprep.subr.mxu0 0.0
      %39 = vmatpush1.msra.mxu0 0.0
      %40 = vmatprep.subr.mxu0 0.0
      %41 = vmatpush1.msra.mxu0 0.0
      %42 = vmatprep.subr.mxu0 0.0
      %43 = vmatpush1.msra.mxu0 0.0
      %44 = vmatprep.subr.mxu0 0.0
      %45 = vmatpush1.msra.mxu0 0.0
      %46 = vmatprep.subr.mxu0 0.0
      %47 = vmatpush1.msra.mxu0 0.0
      %48 = vmatprep.subr.mxu0 0.0
      %49 = vmatpush1.msra.mxu0 0.0
      %50 = vmatprep.subr.mxu0 0.0
      %51 = vmatpush1.msra.mxu0 0.0
      %52 = vmatprep.subr.mxu0 0.0
      %53 = vmatpush1.msra.mxu0 0.0
      %54 = vmatprep.subr.mxu0 0.0
      %55 = vmatpush1.msra.mxu0 0.0
      %56 = vmatprep.subr.mxu0 0.0
      %57 = vmatpush1.msra.mxu0 0.0
      %58 = vmatprep.subr.mxu0 0.0
      %59 = vmatpush1.msra.mxu0 0.0
      %60 = vmatprep.subr.mxu0 0.0
      %61 = vmatpush1.msra.mxu0 0.0
      %62 = vmatprep.subr.mxu0 0.0
      %63 = vmatpush1.msra.mxu0 %v30
      %64 = vmatprep.subr.mxu0 0.0
      %65 = vmatpush1.msra.mxu0 %v29
      %66 = vmatprep.subr.mxu0 0.0
      %67 = vmatpush1.msra.mxu0 %v28
      %68 = vmatprep.subr.mxu0 0.0
      %69 = vmatpush1.msra.mxu0 %v27
      %70 = vmatprep.subr.mxu0 0.0
      %71 = vmatpush2.msra.mxu0 0.0
      %72 = vmatprep.subr.mxu0 0.0
      %73 = vmatpush2.msra.mxu0 0.0
      %74 = vmatprep.subr.mxu0 0.0
      %75 = vmatpush2.msra.mxu0 0.0
      %76 = vmatprep.subr.mxu0 0.0
      %77 = vmatpush2.msra.mxu0 0.0
      %78 = vmatprep.subr.mxu0 0.0
      %79 = vmatpush2.msra.mxu0 0.0
      %80 = vmatprep.subr.mxu0 0.0
      %81 = vmatpush2.msra.mxu0 0.0
      %82 = vmatprep.subr.mxu0 0.0
      %83 = vmatpush2.msra.mxu0 0.0
      %84 = vmatprep.subr.mxu0 0.0
      %85 = vmatpush2.msra.mxu0 0.0
      %86 = vmatprep.subr.mxu0 0.0
      %87 = vmatpush2.msra.mxu0 0.0
      %88 = vmatprep.subr.mxu0 0.0
      %89 = vmatpush2.msra.mxu0 0.0
      %90 = vmatprep.subr.mxu0 0.0
      %91 = vmatpush2.msra.mxu0 0.0
      %92 = vmatprep.subr.mxu0 0.0
      %93 = vmatpush2.msra.mxu0 0.0
      %94 = vmatprep.subr.mxu0 0.0
      %95 = vmatpush2.msra.mxu0 0.0
      %96 = vmatprep.subr.mxu0 0.0
      %97 = vmatpush2.msra.mxu0 0.0
      %98 = vmatprep.subr.mxu0 0.0
      %99 = vmatpush2.msra.mxu0 0.0
      %100 = vmatprep.subr.mxu0 0.0
      %101 = vmatpush2.msra.mxu0 0.0
      %102 = vmatprep.mubr.f32.mxu0 0.0
      %103 = vmatmul.mubr.f32.gmra.mxu0 %v33
      %v104 = vpop.f32.mrf.mxu0
      %v105 = vadd.f32 0.0, %v104
      %v106 = vpop.f32.mrf.mxu0
      %107 = vmatprep.mubr.f32.mxu0 0.0
      %108 = vmatmul.mubr.f32.gmra.mxu0 %v36
      %v109 = vpop.f32.mrf.mxu0
      %v110 = vadd.f32 0.0, %v109
      %v111 = vpop.f32.mrf.mxu0
      %112 = vdwg.mxu0
      %vm113 = vcmask 130048
      %114 = vst.msk [vmem:[#allocation2] sm:$0xff] %vm113, %v105
      %115 = vst.msk [vmem:[#allocation2 + $0x8] sm:$0xff] %vm113, %v110
      %v116 = vld [vmem:[%s2] sm:$0xff]
      %v117 = vld [vmem:[%s2 + $0x8] sm:$0xff]
      %v118 = vld [vmem:[%s2 + $0x10] sm:$0xff]
      %v119 = vld [vmem:[%s2 + $0x18] sm:$0xff]
      %120 = vmatprep.subr.mxu0 0.0
      %121 = vmatpush1.msra.mxu0 0.0
      %122 = vmatprep.subr.mxu0 0.0
      %123 = vmatpush1.msra.mxu0 0.0
      %124 = vmatprep.subr.mxu0 0.0
      %125 = vmatpush1.msra.mxu0 0.0
      %126 = vmatprep.subr.mxu0 0.0
      %127 = vmatpush1.msra.mxu0 0.0
      %128 = vmatprep.subr.mxu0 0.0
      %129 = vmatpush1.msra.mxu0 0.0
      %130 = vmatprep.subr.mxu0 0.0
      %131 = vmatpush1.msra.mxu0 0.0
      %132 = vmatprep.subr.mxu0 0.0
      %133 = vmatpush1.msra.mxu0 0.0
      %134 = vmatprep.subr.mxu0 0.0
      %135 = vmatpush1.msra.mxu0 0.0
      %136 = vmatprep.subr.mxu0 0.0
      %137 = vmatpush1.msra.mxu0 0.0
      %138 = vmatprep.subr.mxu0 0.0
      %139 = vmatpush1.msra.mxu0 0.0
      %140 = vmatprep.subr.mxu0 0.0
      %141 = vmatpush1.msra.mxu0 0.0
      %142 = vmatprep.subr.mxu0 0.0
      %143 = vmatpush1.msra.mxu0 0.0
      %144 = vmatprep.subr.mxu0 0.0
      %145 = vmatpush1.msra.mxu0 %v119
      %146 = vmatprep.subr.mxu0 0.0
      %147 = vmatpush1.msra.mxu0 %v118
      %148 = vmatprep.subr.mxu0 0.0
      %149 = vmatpush1.msra.mxu0 %v117
      %150 = vmatprep.subr.mxu0 0.0
      %151 = vmatpush1.msra.mxu0 %v116
      %152 = vmatprep.subr.mxu0 0.0
      %153 = vmatpush2.msra.mxu0 0.0
      %154 = vmatprep.subr.mxu0 0.0
      %155 = vmatpush2.msra.mxu0 0.0
      %156 = vmatprep.subr.mxu0 0.0
      %157 = vmatpush2.msra.mxu0 0.0
      %158 = vmatprep.subr.mxu0 0.0
      %159 = vmatpush2.msra.mxu0 0.0
      %160 = vmatprep.subr.mxu0 0.0
      %161 = vmatpush2.msra.mxu0 0.0
      %162 = vmatprep.subr.mxu0 0.0
      %163 = vmatpush2.msra.mxu0 0.0
      %164 = vmatprep.subr.mxu0 0.0
      %165 = vmatpush2.msra.mxu0 0.0
      %166 = vmatprep.subr.mxu0 0.0
      %167 = vmatpush2.msra.mxu0 0.0
      %168 = vmatprep.subr.mxu0 0.0
      %169 = vmatpush2.msra.mxu0 0.0
      %170 = vmatprep.subr.mxu0 0.0
      %171 = vmatpush2.msra.mxu0 0.0
      %172 = vmatprep.subr.mxu0 0.0
      %173 = vmatpush2.msra.mxu0 0.0
      %174 = vmatprep.subr.mxu0 0.0
      %175 = vmatpush2.msra.mxu0 0.0
      %176 = vmatprep.subr.mxu0 0.0
      %177 = vmatpush2.msra.mxu0 0.0
      %178 = vmatprep.subr.mxu0 0.0
      %179 = vmatpush2.msra.mxu0 0.0
      %180 = vmatprep.subr.mxu0 0.0
      %181 = vmatpush2.msra.mxu0 0.0
      %182 = vmatprep.subr.mxu0 0.0
      %183 = vmatpush2.msra.mxu0 0.0
      %184 = vmatprep.mubr.f32.mxu0 0.0
      %185 = vmatmul.mubr.f32.gmra.mxu0 %v33
      %v186 = vpop.f32.mrf.mxu0
      %v187 = vadd.f32 0.0, %v186
      %v188 = vpop.f32.mrf.mxu0
      %189 = vmatprep.mubr.f32.mxu0 0.0
      %190 = vmatmul.mubr.f32.gmra.mxu0 %v36
      %v191 = vpop.f32.mrf.mxu0
      %v192 = vadd.f32 0.0, %v191
      %v193 = vpop.f32.mrf.mxu0
      %194 = vdwg.mxu0
      %195 = vst.msk [vmem:[#allocation3] sm:$0xff] %vm113, %v187
      %196 = vst.msk [vmem:[#allocation3 + $0x8] sm:$0xff] %vm113, %v192
      %s197 = scalar_lea.vmem %s1, 32
      %v198 = vld [vmem:[%s197] sm:$0xff]
      %v199 = vld [vmem:[%s197 + $0x8] sm:$0xff]
      %v200 = vld [vmem:[%s197 + $0x10] sm:$0xff]
      %v201 = vld [vmem:[%s197 + $0x18] sm:$0xff]
      %202 = vmatprep.subr.mxu0 0.0
      %203 = vmatpush1.msra.mxu0 0.0
      %204 = vmatprep.subr.mxu0 0.0
      %205 = vmatpush1.msra.mxu0 0.0
      %206 = vmatprep.subr.mxu0 0.0
      %207 = vmatpush1.msra.mxu0 0.0
      %208 = vmatprep.subr.mxu0 0.0
      %209 = vmatpush1.msra.mxu0 0.0
      %210 = vmatprep.subr.mxu0 0.0
      %211 = vmatpush1.msra.mxu0 0.0
      %212 = vmatprep.subr.mxu0 0.0
      %213 = vmatpush1.msra.mxu0 0.0
      %214 = vmatprep.subr.mxu0 0.0
      %215 = vmatpush1.msra.mxu0 0.0
      %216 = vmatprep.subr.mxu0 0.0
      %217 = vmatpush1.msra.mxu0 0.0
      %218 = vmatprep.subr.mxu0 0.0
      %219 = vmatpush1.msra.mxu0 0.0
      %220 = vmatprep.subr.mxu0 0.0
      %221 = vmatpush1.msra.mxu0 0.0
      %222 = vmatprep.subr.mxu0 0.0
      %223 = vmatpush1.msra.mxu0 0.0
      %224 = vmatprep.subr.mxu0 0.0
      %225 = vmatpush1.msra.mxu0 0.0
      %226 = vmatprep.subr.mxu0 0.0
      %227 = vmatpush1.msra.mxu0 %v201
      %228 = vmatprep.subr.mxu0 0.0
      %229 = vmatpush1.msra.mxu0 %v200
      %230 = vmatprep.subr.mxu0 0.0
      %231 = vmatpush1.msra.mxu0 %v199
      %232 = vmatprep.subr.mxu0 0.0
      %233 = vmatpush1.msra.mxu0 %v198
      %234 = vmatprep.subr.mxu0 0.0
      %235 = vmatpush2.msra.mxu0 0.0
      %236 = vmatprep.subr.mxu0 0.0
      %237 = vmatpush2.msra.mxu0 0.0
      %238 = vmatprep.subr.mxu0 0.0
      %239 = vmatpush2.msra.mxu0 0.0
      %240 = vmatprep.subr.mxu0 0.0
      %241 = vmatpush2.msra.mxu0 0.0
      %242 = vmatprep.subr.mxu0 0.0
      %243 = vmatpush2.msra.mxu0 0.0
      %244 = vmatprep.subr.mxu0 0.0
      %245 = vmatpush2.msra.mxu0 0.0
      %246 = vmatprep.subr.mxu0 0.0
      %247 = vmatpush2.msra.mxu0 0.0
      %248 = vmatprep.subr.mxu0 0.0
      %249 = vmatpush2.msra.mxu0 0.0
      %250 = vmatprep.subr.mxu0 0.0
      %251 = vmatpush2.msra.mxu0 0.0
      %252 = vmatprep.subr.mxu0 0.0
      %253 = vmatpush2.msra.mxu0 0.0
      %254 = vmatprep.subr.mxu0 0.0
      %255 = vmatpush2.msra.mxu0 0.0
      %256 = vmatprep.subr.mxu0 0.0
      %257 = vmatpush2.msra.mxu0 0.0
      %258 = vmatprep.subr.mxu0 0.0
      %259 = vmatpush2.msra.mxu0 0.0
      %260 = vmatprep.subr.mxu0 0.0
      %261 = vmatpush2.msra.mxu0 0.0
      %262 = vmatprep.subr.mxu0 0.0
      %263 = vmatpush2.msra.mxu0 0.0
      %264 = vmatprep.subr.mxu0 0.0
      %265 = vmatpush2.msra.mxu0 0.0
      %266 = vmatprep.mubr.f32.mxu0 0.0
      %267 = vmatmul.mubr.f32.gmra.mxu0 %v33
      %v268 = vpop.f32.mrf.mxu0
      %v269 = vadd.f32 0.0, %v268
      %v270 = vpop.f32.mrf.mxu0
      %271 = vmatprep.mubr.f32.mxu0 0.0
      %272 = vmatmul.mubr.f32.gmra.mxu0 %v36
      %v273 = vpop.f32.mrf.mxu0
      %v274 = vadd.f32 0.0, %v273
      %v275 = vpop.f32.mrf.mxu0
      %276 = vdwg.mxu0
      %s277 = scalar_lea.vmem [#allocation2], 16
      %278 = vst.msk [vmem:[%s277] sm:$0xff] %vm113, %v269
      %279 = vst.msk [vmem:[%s277 + $0x8] sm:$0xff] %vm113, %v274
      %s280 = scalar_lea.vmem %s2, 32
      %v281 = vld [vmem:[%s280] sm:$0xff]
      %v282 = vld [vmem:[%s280 + $0x8] sm:$0xff]
      %v283 = vld [vmem:[%s280 + $0x10] sm:$0xff]
      %v284 = vld [vmem:[%s280 + $0x18] sm:$0xff]
      %285 = vmatprep.subr.mxu0 0.0
      %286 = vmatpush1.msra.mxu0 0.0
      %287 = vmatprep.subr.mxu0 0.0
      %288 = vmatpush1.msra.mxu0 0.0
      %289 = vmatprep.subr.mxu0 0.0
      %290 = vmatpush1.msra.mxu0 0.0
      %291 = vmatprep.subr.mxu0 0.0
      %292 = vmatpush1.msra.mxu0 0.0
      %293 = vmatprep.subr.mxu0 0.0
      %294 = vmatpush1.msra.mxu0 0.0
      %295 = vmatprep.subr.mxu0 0.0
      %296 = vmatpush1.msra.mxu0 0.0
      %297 = vmatprep.subr.mxu0 0.0
      %298 = vmatpush1.msra.mxu0 0.0
      %299 = vmatprep.subr.mxu0 0.0
      %300 = vmatpush1.msra.mxu0 0.0
      %301 = vmatprep.subr.mxu0 0.0
      %302 = vmatpush1.msra.mxu0 0.0
      %303 = vmatprep.subr.mxu0 0.0
      %304 = vmatpush1.msra.mxu0 0.0
      %305 = vmatprep.subr.mxu0 0.0
      %306 = vmatpush1.msra.mxu0 0.0
      %307 = vmatprep.subr.mxu0 0.0
      %308 = vmatpush1.msra.mxu0 0.0
      %309 = vmatprep.subr.mxu0 0.0
      %310 = vmatpush1.msra.mxu0 %v284
      %311 = vmatprep.subr.mxu0 0.0
      %312 = vmatpush1.msra.mxu0 %v283
      %313 = vmatprep.subr.mxu0 0.0
      %314 = vmatpush1.msra.mxu0 %v282
      %315 = vmatprep.subr.mxu0 0.0
      %316 = vmatpush1.msra.mxu0 %v281
      %317 = vmatprep.subr.mxu0 0.0
      %318 = vmatpush2.msra.mxu0 0.0
      %319 = vmatprep.subr.mxu0 0.0
      %320 = vmatpush2.msra.mxu0 0.0
      %321 = vmatprep.subr.mxu0 0.0
      %322 = vmatpush2.msra.mxu0 0.0
      %323 = vmatprep.subr.mxu0 0.0
      %324 = vmatpush2.msra.mxu0 0.0
      %325 = vmatprep.subr.mxu0 0.0
      %326 = vmatpush2.msra.mxu0 0.0
      %327 = vmatprep.subr.mxu0 0.0
      %328 = vmatpush2.msra.mxu0 0.0
      %329 = vmatprep.subr.mxu0 0.0
      %330 = vmatpush2.msra.mxu0 0.0
      %331 = vmatprep.subr.mxu0 0.0
      %332 = vmatpush2.msra.mxu0 0.0
      %333 = vmatprep.subr.mxu0 0.0
      %334 = vmatpush2.msra.mxu0 0.0
      %335 = vmatprep.subr.mxu0 0.0
      %336 = vmatpush2.msra.mxu0 0.0
      %337 = vmatprep.subr.mxu0 0.0
      %338 = vmatpush2.msra.mxu0 0.0
      %339 = vmatprep.subr.mxu0 0.0
      %340 = vmatpush2.msra.mxu0 0.0
      %341 = vmatprep.subr.mxu0 0.0
      %342 = vmatpush2.msra.mxu0 0.0
      %343 = vmatprep.subr.mxu0 0.0
      %344 = vmatpush2.msra.mxu0 0.0
      %345 = vmatprep.subr.mxu0 0.0
      %346 = vmatpush2.msra.mxu0 0.0
      %347 = vmatprep.subr.mxu0 0.0
      %348 = vmatpush2.msra.mxu0 0.0
      %349 = vmatprep.mubr.f32.mxu0 0.0
      %350 = vmatmul.mubr.f32.gmra.mxu0 %v33
      %v351 = vpop.f32.mrf.mxu0
      %v352 = vadd.f32 0.0, %v351
      %v353 = vpop.f32.mrf.mxu0
      %354 = vmatprep.mubr.f32.mxu0 0.0
      %355 = vmatmul.mubr.f32.gmra.mxu0 %v36
      %v356 = vpop.f32.mrf.mxu0
      %v357 = vadd.f32 0.0, %v356
      %v358 = vpop.f32.mrf.mxu0
      %359 = vdwg.mxu0
      %s360 = scalar_lea.vmem [#allocation3], 16
      %361 = vst.msk [vmem:[%s360] sm:$0xff] %vm113, %v352
      %362 = vst.msk [vmem:[%s360 + $0x8] sm:$0xff] %vm113, %v357
    $region25: #{tpu_custom_call.1} parent=1 // pred_fallthru
      _
    %v363 = vld [vmem:[%s0] sm:$0xff]
    %v364 = vld [vmem:[%s0 + $0x8] sm:$0xff]
    %v365 = vld [vmem:[%s3] sm:$0xff]
    %v366 = vld [vmem:[%s3 + $0x8] sm:$0xff]
    %v367 = vld [vmem:[%s3 + $0x10] sm:$0xff]
    %v368 = vld [vmem:[%s3 + $0x18] sm:$0xff]
    %vm369 = vcmask 261120
    %v371 = vsel %vm369, %v363, 0
    %v374 = vsel %vm369, %v364, 0
    %376 = vmatprep.subr.mxu0 0.0
    %377 = vmatpush1.msra.mxu0 0.0
    %378 = vmatprep.subr.mxu0 0.0
    %379 = vmatpush1.msra.mxu0 0.0
    %380 = vmatprep.subr.mxu0 0.0
    %381 = vmatpush1.msra.mxu0 0.0
    %382 = vmatprep.subr.mxu0 0.0
    %383 = vmatpush1.msra.mxu0 0.0
    %384 = vmatprep.subr.mxu0 0.0
    %385 = vmatpush1.msra.mxu0 0.0
    %386 = vmatprep.subr.mxu0 0.0
    %387 = vmatpush1.msra.mxu0 0.0
    %388 = vmatprep.subr.mxu0 0.0
    %389 = vmatpush1.msra.mxu0 0.0
    %390 = vmatprep.subr.mxu0 0.0
    %391 = vmatpush1.msra.mxu0 0.0
    %392 = vmatprep.subr.mxu0 0.0
    %393 = vmatpush1.msra.mxu0 0.0
    %394 = vmatprep.subr.mxu0 0.0
    %395 = vmatpush1.msra.mxu0 0.0
    %396 = vmatprep.subr.mxu0 0.0
    %397 = vmatpush1.msra.mxu0 0.0
    %398 = vmatprep.subr.mxu0 0.0
    %399 = vmatpush1.msra.mxu0 0.0
    %400 = vmatprep.subr.mxu0 0.0
    %401 = vmatpush1.msra.mxu0 %v368
    %402 = vmatprep.subr.mxu0 0.0
    %403 = vmatpush1.msra.mxu0 %v367
    %404 = vmatprep.subr.mxu0 0.0
    %405 = vmatpush1.msra.mxu0 %v366
    %406 = vmatprep.subr.mxu0 0.0
    %407 = vmatpush1.msra.mxu0 %v365
    %408 = vmatprep.subr.mxu0 0.0
    %409 = vmatpush2.msra.mxu0 0.0
    %410 = vmatprep.subr.mxu0 0.0
    %411 = vmatpush2.msra.mxu0 0.0
    %412 = vmatprep.subr.mxu0 0.0
    %413 = vmatpush2.msra.mxu0 0.0
    %414 = vmatprep.subr.mxu0 0.0
    %415 = vmatpush2.msra.mxu0 0.0
    %416 = vmatprep.subr.mxu0 0.0
    %417 = vmatpush2.msra.mxu0 0.0
    %418 = vmatprep.subr.mxu0 0.0
    %419 = vmatpush2.msra.mxu0 0.0
    %420 = vmatprep.subr.mxu0 0.0
    %421 = vmatpush2.msra.mxu0 0.0
    %422 = vmatprep.subr.mxu0 0.0
    %423 = vmatpush2.msra.mxu0 0.0
    %424 = vmatprep.subr.mxu0 0.0
    %425 = vmatpush2.msra.mxu0 0.0
    %426 = vmatprep.subr.mxu0 0.0
    %427 = vmatpush2.msra.mxu0 0.0
    %428 = vmatprep.subr.mxu0 0.0
    %429 = vmatpush2.msra.mxu0 0.0
    %430 = vmatprep.subr.mxu0 0.0
    %431 = vmatpush2.msra.mxu0 0.0
    %432 = vmatprep.subr.mxu0 0.0
    %433 = vmatpush2.msra.mxu0 0.0
    %434 = vmatprep.subr.mxu0 0.0
    %435 = vmatpush2.msra.mxu0 0.0
    %436 = vmatprep.subr.mxu0 0.0
    %437 = vmatpush2.msra.mxu0 0.0
    %438 = vmatprep.subr.mxu0 0.0
    %439 = vmatpush2.msra.mxu0 0.0
    %440 = vmatprep.mubr.f32.mxu0 0.0
    %441 = vmatmul.mubr.f32.gmra.mxu0 %v371
    %v442 = vpop.f32.mrf.mxu0
    %v443 = vadd.f32 0.0, %v442
    %v444 = vpop.f32.mrf.mxu0
    %445 = vmatprep.mubr.f32.mxu0 0.0
    %446 = vmatmul.mubr.f32.gmra.mxu0 %v374
    %v447 = vpop.f32.mrf.mxu0
    %v448 = vadd.f32 0.0, %v447
    %v449 = vpop.f32.mrf.mxu0
    %450 = vdwg.mxu0
    %v451 = vld [vmem:[#allocation2] sm:$0xff]
    %v452 = vld [vmem:[#allocation3] sm:$0xff]
    %vm453 = vcmask 130048
    %v455 = vsel %vm453, %v443, 0
    %v458 = vsel %vm453, %v451, 0
    %460 = vmatprep.subr.mxu0 0.0
    %461 = vmatpush1.xpose.msra.mxu0 0.0
    %462 = vmatprep.subr.mxu0 0.0
    %463 = vmatpush1.xpose.msra.mxu0 0.0
    %464 = vmatprep.subr.mxu0 0.0
    %465 = vmatpush1.xpose.msra.mxu0 0.0
    %466 = vmatprep.subr.mxu0 0.0
    %467 = vmatpush1.xpose.msra.mxu0 0.0
    %468 = vmatprep.subr.mxu0 0.0
    %469 = vmatpush1.xpose.msra.mxu0 0.0
    %470 = vmatprep.subr.mxu0 0.0
    %471 = vmatpush1.xpose.msra.mxu0 0.0
    %472 = vmatprep.subr.mxu0 0.0
    %473 = vmatpush1.xpose.msra.mxu0 0.0
    %474 = vmatprep.subr.mxu0 0.0
    %475 = vmatpush1.xpose.msra.mxu0 0.0
    %476 = vmatprep.subr.mxu0 0.0
    %477 = vmatpush1.xpose.msra.mxu0 0.0
    %478 = vmatprep.subr.mxu0 0.0
    %479 = vmatpush1.xpose.msra.mxu0 0.0
    %480 = vmatprep.subr.mxu0 0.0
    %481 = vmatpush1.xpose.msra.mxu0 0.0
    %482 = vmatprep.subr.mxu0 0.0
    %483 = vmatpush1.xpose.msra.mxu0 0.0
    %484 = vmatprep.subr.mxu0 0.0
    %485 = vmatpush1.xpose.msra.mxu0 0.0
    %486 = vmatprep.subr.mxu0 0.0
    %487 = vmatpush1.xpose.msra.mxu0 0.0
    %488 = vmatprep.subr.mxu0 0.0
    %489 = vmatpush1.xpose.msra.mxu0 0.0
    %490 = vmatprep.subr.mxu0 0.0
    %491 = vmatpush1.xpose.msra.mxu0 %v458
    %492 = vmatprep.subr.mxu0 0.0
    %493 = vmatpush2.xpose.msra.mxu0 0.0
    %494 = vmatprep.subr.mxu0 0.0
    %495 = vmatpush2.xpose.msra.mxu0 0.0
    %496 = vmatprep.subr.mxu0 0.0
    %497 = vmatpush2.xpose.msra.mxu0 0.0
    %498 = vmatprep.subr.mxu0 0.0
    %499 = vmatpush2.xpose.msra.mxu0 0.0
    %500 = vmatprep.subr.mxu0 0.0
    %501 = vmatpush2.xpose.msra.mxu0 0.0
    %502 = vmatprep.subr.mxu0 0.0
    %503 = vmatpush2.xpose.msra.mxu0 0.0
    %504 = vmatprep.subr.mxu0 0.0
    %505 = vmatpush2.xpose.msra.mxu0 0.0
    %506 = vmatprep.subr.mxu0 0.0
    %507 = vmatpush2.xpose.msra.mxu0 0.0
    %508 = vmatprep.subr.mxu0 0.0
    %509 = vmatpush2.xpose.msra.mxu0 0.0
    %510 = vmatprep.subr.mxu0 0.0
    %511 = vmatpush2.xpose.msra.mxu0 0.0
    %512 = vmatprep.subr.mxu0 0.0
    %513 = vmatpush2.xpose.msra.mxu0 0.0
    %514 = vmatprep.subr.mxu0 0.0
    %515 = vmatpush2.xpose.msra.mxu0 0.0
    %516 = vmatprep.subr.mxu0 0.0
    %517 = vmatpush2.xpose.msra.mxu0 0.0
    %518 = vmatprep.subr.mxu0 0.0
    %519 = vmatpush2.xpose.msra.mxu0 0.0
    %520 = vmatprep.subr.mxu0 0.0
    %521 = vmatpush2.xpose.msra.mxu0 0.0
    %522 = vmatprep.subr.mxu0 0.0
    %523 = vmatpush2.xpose.msra.mxu0 0.0
    %524 = vmatprep.mubr.f32.mxu0 0.0
    %525 = vmatmul.mubr.f32.gmra.mxu0 %v455
    %v526 = vpop.f32.mrf.mxu0
    %v527 = vadd.f32 0.0, %v526
    %v528 = vpop.f32.mrf.mxu0
    %529 = vdwg.mxu0
    %vm530 = vcmask 64512
    %v531 = vsel %vm530, %v527, -inf
    %532 = vmax.xlane.f32.xlu0 %v531
    %v533 = vpop.xlane.xlu0 %532
    %v534 = vsub.f32 %v527, %v533
    %v535 = vmul.f32 %v534, 1.442695
    %v536 = vpow.pop %v535
    %v537 = vsel %vm530, %v536, 0.0
    %538 = vadd.xlane.f32.xlu0 %v537
    %v539 = vpop.xlane.xlu0 %538
    %v540 = vrcp.pop %v539
    %v541 = vmul.f32 %v536, %v540
    %v543 = vsel %vm530, %v541, 0
    %545 = vmatprep.subr.mxu0 0.0
    %546 = vmatpush1.msra.mxu0 0.0
    %547 = vmatprep.subr.mxu0 0.0
    %548 = vmatpush1.msra.mxu0 0.0
    %549 = vmatprep.subr.mxu0 0.0
    %550 = vmatpush1.msra.mxu0 0.0
    %551 = vmatprep.subr.mxu0 0.0
    %552 = vmatpush1.msra.mxu0 0.0
    %553 = vmatprep.subr.mxu0 0.0
    %554 = vmatpush1.msra.mxu0 0.0
    %555 = vmatprep.subr.mxu0 0.0
    %556 = vmatpush1.msra.mxu0 0.0
    %557 = vmatprep.subr.mxu0 0.0
    %558 = vmatpush1.msra.mxu0 0.0
    %559 = vmatprep.subr.mxu0 0.0
    %560 = vmatpush1.msra.mxu0 0.0
    %561 = vmatprep.subr.mxu0 0.0
    %562 = vmatpush1.msra.mxu0 0.0
    %563 = vmatprep.subr.mxu0 0.0
    %564 = vmatpush1.msra.mxu0 0.0
    %565 = vmatprep.subr.mxu0 0.0
    %566 = vmatpush1.msra.mxu0 0.0
    %567 = vmatprep.subr.mxu0 0.0
    %568 = vmatpush1.msra.mxu0 0.0
    %569 = vmatprep.subr.mxu0 0.0
    %570 = vmatpush1.msra.mxu0 0.0
    %571 = vmatprep.subr.mxu0 0.0
    %572 = vmatpush1.msra.mxu0 0.0
    %573 = vmatprep.subr.mxu0 0.0
    %574 = vmatpush1.msra.mxu0 0.0
    %575 = vmatprep.subr.mxu0 0.0
    %576 = vmatpush1.msra.mxu0 %v452
    %577 = vmatprep.subr.mxu0 0.0
    %578 = vmatpush2.msra.mxu0 0.0
    %579 = vmatprep.subr.mxu0 0.0
    %580 = vmatpush2.msra.mxu0 0.0
    %581 = vmatprep.subr.mxu0 0.0
    %582 = vmatpush2.msra.mxu0 0.0
    %583 = vmatprep.subr.mxu0 0.0
    %584 = vmatpush2.msra.mxu0 0.0
    %585 = vmatprep.subr.mxu0 0.0
    %586 = vmatpush2.msra.mxu0 0.0
    %587 = vmatprep.subr.mxu0 0.0
    %588 = vmatpush2.msra.mxu0 0.0
    %589 = vmatprep.subr.mxu0 0.0
    %590 = vmatpush2.msra.mxu0 0.0
    %591 = vmatprep.subr.mxu0 0.0
    %592 = vmatpush2.msra.mxu0 0.0
    %593 = vmatprep.subr.mxu0 0.0
    %594 = vmatpush2.msra.mxu0 0.0
    %595 = vmatprep.subr.mxu0 0.0
    %596 = vmatpush2.msra.mxu0 0.0
    %597 = vmatprep.subr.mxu0 0.0
    %598 = vmatpush2.msra.mxu0 0.0
    %599 = vmatprep.subr.mxu0 0.0
    %600 = vmatpush2.msra.mxu0 0.0
    %601 = vmatprep.subr.mxu0 0.0
    %602 = vmatpush2.msra.mxu0 0.0
    %603 = vmatprep.subr.mxu0 0.0
    %604 = vmatpush2.msra.mxu0 0.0
    %605 = vmatprep.subr.mxu0 0.0
    %606 = vmatpush2.msra.mxu0 0.0
    %607 = vmatprep.subr.mxu0 0.0
    %608 = vmatpush2.msra.mxu0 0.0
    %609 = vmatprep.mubr.f32.mxu0 0.0
    %610 = vmatmul.mubr.f32.gmra.mxu0 %v543
    %v611 = vpop.f32.mrf.mxu0
    %v612 = vadd.f32 0.0, %v611
    %v613 = vpop.f32.mrf.mxu0
    %614 = vdwg.mxu0
    %v615 = vld [vmem:[%s4] sm:$0xff]
    %v616 = vld [vmem:[%s4 + $0x8] sm:$0xff]
    %s617 = scalar_lea.vmem [#allocation2], 8
    %v618 = vld [vmem:[%s617] sm:$0xff]
    %s619 = scalar_lea.vmem [#allocation3], 8
    %v620 = vld [vmem:[%s619] sm:$0xff]
    %v622 = vsel %vm453, %v448, 0
    %v625 = vsel %vm453, %v618, 0
    %627 = vmatprep.subr.mxu0 0.0
    %628 = vmatpush1.xpose.msra.mxu0 0.0
    %629 = vmatprep.subr.mxu0 0.0
    %630 = vmatpush1.xpose.msra.mxu0 0.0
    %631 = vmatprep.subr.mxu0 0.0
    %632 = vmatpush1.xpose.msra.mxu0 0.0
    %633 = vmatprep.subr.mxu0 0.0
    %634 = vmatpush1.xpose.msra.mxu0 0.0
    %635 = vmatprep.subr.mxu0 0.0
    %636 = vmatpush1.xpose.msra.mxu0 0.0
    %637 = vmatprep.subr.mxu0 0.0
    %638 = vmatpush1.xpose.msra.mxu0 0.0
    %639 = vmatprep.subr.mxu0 0.0
    %640 = vmatpush1.xpose.msra.mxu0 0.0
    %641 = vmatprep.subr.mxu0 0.0
    %642 = vmatpush1.xpose.msra.mxu0 0.0
    %643 = vmatprep.subr.mxu0 0.0
    %644 = vmatpush1.xpose.msra.mxu0 0.0
    %645 = vmatprep.subr.mxu0 0.0
    %646 = vmatpush1.xpose.msra.mxu0 0.0
    %647 = vmatprep.subr.mxu0 0.0
    %648 = vmatpush1.xpose.msra.mxu0 0.0
    %649 = vmatprep.subr.mxu0 0.0
    %650 = vmatpush1.xpose.msra.mxu0 0.0
    %651 = vmatprep.subr.mxu0 0.0
    %652 = vmatpush1.xpose.msra.mxu0 0.0
    %653 = vmatprep.subr.mxu0 0.0
    %654 = vmatpush1.xpose.msra.mxu0 0.0
    %655 = vmatprep.subr.mxu0 0.0
    %656 = vmatpush1.xpose.msra.mxu0 0.0
    %657 = vmatprep.subr.mxu0 0.0
    %658 = vmatpush1.xpose.msra.mxu0 %v625
    %659 = vmatprep.subr.mxu0 0.0
    %660 = vmatpush2.xpose.msra.mxu0 0.0
    %661 = vmatprep.subr.mxu0 0.0
    %662 = vmatpush2.xpose.msra.mxu0 0.0
    %663 = vmatprep.subr.mxu0 0.0
    %664 = vmatpush2.xpose.msra.mxu0 0.0
    %665 = vmatprep.subr.mxu0 0.0
    %666 = vmatpush2.xpose.msra.mxu0 0.0
    %667 = vmatprep.subr.mxu0 0.0
    %668 = vmatpush2.xpose.msra.mxu0 0.0
    %669 = vmatprep.subr.mxu0 0.0
    %670 = vmatpush2.xpose.msra.mxu0 0.0
    %671 = vmatprep.subr.mxu0 0.0
    %672 = vmatpush2.xpose.msra.mxu0 0.0
    %673 = vmatprep.subr.mxu0 0.0
    %674 = vmatpush2.xpose.msra.mxu0 0.0
    %675 = vmatprep.subr.mxu0 0.0
    %676 = vmatpush2.xpose.msra.mxu0 0.0
    %677 = vmatprep.subr.mxu0 0.0
    %678 = vmatpush2.xpose.msra.mxu0 0.0
    %679 = vmatprep.subr.mxu0 0.0
    %680 = vmatpush2.xpose.msra.mxu0 0.0
    %681 = vmatprep.subr.mxu0 0.0
    %682 = vmatpush2.xpose.msra.mxu0 0.0
    %683 = vmatprep.subr.mxu0 0.0
    %684 = vmatpush2.xpose.msra.mxu0 0.0
    %685 = vmatprep.subr.mxu0 0.0
    %686 = vmatpush2.xpose.msra.mxu0 0.0
    %687 = vmatprep.subr.mxu0 0.0
    %688 = vmatpush2.xpose.msra.mxu0 0.0
    %689 = vmatprep.subr.mxu0 0.0
    %690 = vmatpush2.xpose.msra.mxu0 0.0
    %691 = vmatprep.mubr.f32.mxu0 0.0
    %692 = vmatmul.mubr.f32.gmra.mxu0 %v622
    %v693 = vpop.f32.mrf.mxu0
    %v694 = vadd.f32 0.0, %v693
    %v695 = vpop.f32.mrf.mxu0
    %696 = vdwg.mxu0
    %v697 = vsel %vm530, %v694, -inf
    %698 = vmax.xlane.f32.xlu0 %v697
    %v699 = vpop.xlane.xlu0 %698
    %v700 = vsub.f32 %v694, %v699
    %v701 = vmul.f32 %v700, 1.442695
    %v702 = vpow.pop %v701
    %v703 = vsel %vm530, %v702, 0.0
    %704 = vadd.xlane.f32.xlu0 %v703
    %v705 = vpop.xlane.xlu0 %704
    %v706 = vrcp.pop %v705
    %v707 = vmul.f32 %v702, %v706
    %v709 = vsel %vm530, %v707, 0
    %711 = vmatprep.subr.mxu0 0.0
    %712 = vmatpush1.msra.mxu0 0.0
    %713 = vmatprep.subr.mxu0 0.0
    %714 = vmatpush1.msra.mxu0 0.0
    %715 = vmatprep.subr.mxu0 0.0
    %716 = vmatpush1.msra.mxu0 0.0
    %717 = vmatprep.subr.mxu0 0.0
    %718 = vmatpush1.msra.mxu0 0.0
    %719 = vmatprep.subr.mxu0 0.0
    %720 = vmatpush1.msra.mxu0 0.0
    %721 = vmatprep.subr.mxu0 0.0
    %722 = vmatpush1.msra.mxu0 0.0
    %723 = vmatprep.subr.mxu0 0.0
    %724 = vmatpush1.msra.mxu0 0.0
    %725 = vmatprep.subr.mxu0 0.0
    %726 = vmatpush1.msra.mxu0 0.0
    %727 = vmatprep.subr.mxu0 0.0
    %728 = vmatpush1.msra.mxu0 0.0
    %729 = vmatprep.subr.mxu0 0.0
    %730 = vmatpush1.msra.mxu0 0.0
    %731 = vmatprep.subr.mxu0 0.0
    %732 = vmatpush1.msra.mxu0 0.0
    %733 = vmatprep.subr.mxu0 0.0
    %734 = vmatpush1.msra.mxu0 0.0
    %735 = vmatprep.subr.mxu0 0.0
    %736 = vmatpush1.msra.mxu0 0.0
    %737 = vmatprep.subr.mxu0 0.0
    %738 = vmatpush1.msra.mxu0 0.0
    %739 = vmatprep.subr.mxu0 0.0
    %740 = vmatpush1.msra.mxu0 0.0
    %741 = vmatprep.subr.mxu0 0.0
    %742 = vmatpush1.msra.mxu0 %v620
    %743 = vmatprep.subr.mxu0 0.0
    %744 = vmatpush2.msra.mxu0 0.0
    %745 = vmatprep.subr.mxu0 0.0
    %746 = vmatpush2.msra.mxu0 0.0
    %747 = vmatprep.subr.mxu0 0.0
    %748 = vmatpush2.msra.mxu0 0.0
    %749 = vmatprep.subr.mxu0 0.0
    %750 = vmatpush2.msra.mxu0 0.0
    %751 = vmatprep.subr.mxu0 0.0
    %752 = vmatpush2.msra.mxu0 0.0
    %753 = vmatprep.subr.mxu0 0.0
    %754 = vmatpush2.msra.mxu0 0.0
    %755 = vmatprep.subr.mxu0 0.0
    %756 = vmatpush2.msra.mxu0 0.0
    %757 = vmatprep.subr.mxu0 0.0
    %758 = vmatpush2.msra.mxu0 0.0
    %759 = vmatprep.subr.mxu0 0.0
    %760 = vmatpush2.msra.mxu0 0.0
    %761 = vmatprep.subr.mxu0 0.0
    %762 = vmatpush2.msra.mxu0 0.0
    %763 = vmatprep.subr.mxu0 0.0
    %764 = vmatpush2.msra.mxu0 0.0
    %765 = vmatprep.subr.mxu0 0.0
    %766 = vmatpush2.msra.mxu0 0.0
    %767 = vmatprep.subr.mxu0 0.0
    %768 = vmatpush2.msra.mxu0 0.0
    %769 = vmatprep.subr.mxu0 0.0
    %770 = vmatpush2.msra.mxu0 0.0
    %771 = vmatprep.subr.mxu0 0.0
    %772 = vmatpush2.msra.mxu0 0.0
    %773 = vmatprep.subr.mxu0 0.0
    %774 = vmatpush2.msra.mxu0 0.0
    %775 = vmatprep.mubr.f32.mxu0 0.0
    %776 = vmatmul.mubr.f32.gmra.mxu0 %v709
    %v777 = vpop.f32.mrf.mxu0
    %v778 = vadd.f32 0.0, %v777
    %v779 = vpop.f32.mrf.mxu0
    %780 = vdwg.mxu0
    %s781 = scalar_lea.vmem %s3, 32
    %v782 = vld [vmem:[%s781] sm:$0xff]
    %v783 = vld [vmem:[%s781 + $0x8] sm:$0xff]
    %v784 = vld [vmem:[%s781 + $0x10] sm:$0xff]
    %v785 = vld [vmem:[%s781 + $0x18] sm:$0xff]
    %786 = vmatprep.subr.mxu0 0.0
    %787 = vmatpush1.msra.mxu0 0.0
    %788 = vmatprep.subr.mxu0 0.0
    %789 = vmatpush1.msra.mxu0 0.0
    %790 = vmatprep.subr.mxu0 0.0
    %791 = vmatpush1.msra.mxu0 0.0
    %792 = vmatprep.subr.mxu0 0.0
    %793 = vmatpush1.msra.mxu0 0.0
    %794 = vmatprep.subr.mxu0 0.0
    %795 = vmatpush1.msra.mxu0 0.0
    %796 = vmatprep.subr.mxu0 0.0
    %797 = vmatpush1.msra.mxu0 0.0
    %798 = vmatprep.subr.mxu0 0.0
    %799 = vmatpush1.msra.mxu0 0.0
    %800 = vmatprep.subr.mxu0 0.0
    %801 = vmatpush1.msra.mxu0 0.0
    %802 = vmatprep.subr.mxu0 0.0
    %803 = vmatpush1.msra.mxu0 0.0
    %804 = vmatprep.subr.mxu0 0.0
    %805 = vmatpush1.msra.mxu0 0.0
    %806 = vmatprep.subr.mxu0 0.0
    %807 = vmatpush1.msra.mxu0 0.0
    %808 = vmatprep.subr.mxu0 0.0
    %809 = vmatpush1.msra.mxu0 0.0
    %810 = vmatprep.subr.mxu0 0.0
    %811 = vmatpush1.msra.mxu0 %v785
    %812 = vmatprep.subr.mxu0 0.0
    %813 = vmatpush1.msra.mxu0 %v784
    %814 = vmatprep.subr.mxu0 0.0
    %815 = vmatpush1.msra.mxu0 %v783
    %816 = vmatprep.subr.mxu0 0.0
    %817 = vmatpush1.msra.mxu0 %v782
    %818 = vmatprep.subr.mxu0 0.0
    %819 = vmatpush2.msra.mxu0 0.0
    %820 = vmatprep.subr.mxu0 0.0
    %821 = vmatpush2.msra.mxu0 0.0
    %822 = vmatprep.subr.mxu0 0.0
    %823 = vmatpush2.msra.mxu0 0.0
    %824 = vmatprep.subr.mxu0 0.0
    %825 = vmatpush2.msra.mxu0 0.0
    %826 = vmatprep.subr.mxu0 0.0
    %827 = vmatpush2.msra.mxu0 0.0
    %828 = vmatprep.subr.mxu0 0.0
    %829 = vmatpush2.msra.mxu0 0.0
    %830 = vmatprep.subr.mxu0 0.0
    %831 = vmatpush2.msra.mxu0 0.0
    %832 = vmatprep.subr.mxu0 0.0
    %833 = vmatpush2.msra.mxu0 0.0
    %834 = vmatprep.subr.mxu0 0.0
    %835 = vmatpush2.msra.mxu0 0.0
    %836 = vmatprep.subr.mxu0 0.0
    %837 = vmatpush2.msra.mxu0 0.0
    %838 = vmatprep.subr.mxu0 0.0
    %839 = vmatpush2.msra.mxu0 0.0
    %840 = vmatprep.subr.mxu0 0.0
    %841 = vmatpush2.msra.mxu0 0.0
    %842 = vmatprep.subr.mxu0 0.0
    %843 = vmatpush2.msra.mxu0 0.0
    %844 = vmatprep.subr.mxu0 0.0
    %845 = vmatpush2.msra.mxu0 0.0
    %846 = vmatprep.subr.mxu0 0.0
    %847 = vmatpush2.msra.mxu0 0.0
    %848 = vmatprep.subr.mxu0 0.0
    %849 = vmatpush2.msra.mxu0 0.0
    %850 = vmatprep.mubr.f32.mxu0 0.0
    %851 = vmatmul.mubr.f32.gmra.mxu0 %v371
    %v852 = vpop.f32.mrf.mxu0
    %v853 = vadd.f32 0.0, %v852
    %v854 = vpop.f32.mrf.mxu0
    %855 = vmatprep.mubr.f32.mxu0 0.0
    %856 = vmatmul.mubr.f32.gmra.mxu0 %v374
    %v857 = vpop.f32.mrf.mxu0
    %v858 = vadd.f32 0.0, %v857
    %v859 = vpop.f32.mrf.mxu0
    %860 = vdwg.mxu0
    %s861 = scalar_lea.vmem [#allocation2], 16
    %v862 = vld [vmem:[%s861] sm:$0xff]
    %s863 = scalar_lea.vmem [#allocation3], 16
    %v864 = vld [vmem:[%s863] sm:$0xff]
    %v866 = vsel %vm453, %v853, 0
    %v869 = vsel %vm453, %v862, 0
    %871 = vmatprep.subr.mxu0 0.0
    %872 = vmatpush1.xpose.msra.mxu0 0.0
    %873 = vmatprep.subr.mxu0 0.0
    %874 = vmatpush1.xpose.msra.mxu0 0.0
    %875 = vmatprep.subr.mxu0 0.0
    %876 = vmatpush1.xpose.msra.mxu0 0.0
    %877 = vmatprep.subr.mxu0 0.0
    %878 = vmatpush1.xpose.msra.mxu0 0.0
    %879 = vmatprep.subr.mxu0 0.0
    %880 = vmatpush1.xpose.msra.mxu0 0.0
    %881 = vmatprep.subr.mxu0 0.0
    %882 = vmatpush1.xpose.msra.mxu0 0.0
    %883 = vmatprep.subr.mxu0 0.0
    %884 = vmatpush1.xpose.msra.mxu0 0.0
    %885 = vmatprep.subr.mxu0 0.0
    %886 = vmatpush1.xpose.msra.mxu0 0.0
    %887 = vmatprep.subr.mxu0 0.0
    %888 = vmatpush1.xpose.msra.mxu0 0.0
    %889 = vmatprep.subr.mxu0 0.0
    %890 = vmatpush1.xpose.msra.mxu0 0.0
    %891 = vmatprep.subr.mxu0 0.0
    %892 = vmatpush1.xpose.msra.mxu0 0.0
    %893 = vmatprep.subr.mxu0 0.0
    %894 = vmatpush1.xpose.msra.mxu0 0.0
    %895 = vmatprep.subr.mxu0 0.0
    %896 = vmatpush1.xpose.msra.mxu0 0.0
    %897 = vmatprep.subr.mxu0 0.0
    %898 = vmatpush1.xpose.msra.mxu0 0.0
    %899 = vmatprep.subr.mxu0 0.0
    %900 = vmatpush1.xpose.msra.mxu0 0.0
    %901 = vmatprep.subr.mxu0 0.0
    %902 = vmatpush1.xpose.msra.mxu0 %v869
    %903 = vmatprep.subr.mxu0 0.0
    %904 = vmatpush2.xpose.msra.mxu0 0.0
    %905 = vmatprep.subr.mxu0 0.0
    %906 = vmatpush2.xpose.msra.mxu0 0.0
    %907 = vmatprep.subr.mxu0 0.0
    %908 = vmatpush2.xpose.msra.mxu0 0.0
    %909 = vmatprep.subr.mxu0 0.0
    %910 = vmatpush2.xpose.msra.mxu0 0.0
    %911 = vmatprep.subr.mxu0 0.0
    %912 = vmatpush2.xpose.msra.mxu0 0.0
    %913 = vmatprep.subr.mxu0 0.0
    %914 = vmatpush2.xpose.msra.mxu0 0.0
    %915 = vmatprep.subr.mxu0 0.0
    %916 = vmatpush2.xpose.msra.mxu0 0.0
    %917 = vmatprep.subr.mxu0 0.0
    %918 = vmatpush2.xpose.msra.mxu0 0.0
    %919 = vmatprep.subr.mxu0 0.0
    %920 = vmatpush2.xpose.msra.mxu0 0.0
    %921 = vmatprep.subr.mxu0 0.0
    %922 = vmatpush2.xpose.msra.mxu0 0.0
    %923 = vmatprep.subr.mxu0 0.0
    %924 = vmatpush2.xpose.msra.mxu0 0.0
    %925 = vmatprep.subr.mxu0 0.0
    %926 = vmatpush2.xpose.msra.mxu0 0.0
    %927 = vmatprep.subr.mxu0 0.0
    %928 = vmatpush2.xpose.msra.mxu0 0.0
    %929 = vmatprep.subr.mxu0 0.0
    %930 = vmatpush2.xpose.msra.mxu0 0.0
    %931 = vmatprep.subr.mxu0 0.0
    %932 = vmatpush2.xpose.msra.mxu0 0.0
    %933 = vmatprep.subr.mxu0 0.0
    %934 = vmatpush2.xpose.msra.mxu0 0.0
    %935 = vmatprep.mubr.f32.mxu0 0.0
    %936 = vmatmul.mubr.f32.gmra.mxu0 %v866
    %v937 = vpop.f32.mrf.mxu0
    %v938 = vadd.f32 0.0, %v937
    %v939 = vpop.f32.mrf.mxu0
    %940 = vdwg.mxu0
    %v941 = vsel %vm530, %v938, -inf
    %942 = vmax.xlane.f32.xlu0 %v941
    %v943 = vpop.xlane.xlu0 %942
    %v944 = vsub.f32 %v938, %v943
    %v945 = vmul.f32 %v944, 1.442695
    %v946 = vpow.pop %v945
    %v947 = vsel %vm530, %v946, 0.0
    %948 = vadd.xlane.f32.xlu0 %v947
    %v949 = vpop.xlane.xlu0 %948
    %v950 = vrcp.pop %v949
    %v951 = vmul.f32 %v946, %v950
    %v953 = vsel %vm530, %v951, 0
    %955 = vmatprep.subr.mxu0 0.0
    %956 = vmatpush1.msra.mxu0 0.0
    %957 = vmatprep.subr.mxu0 0.0
    %958 = vmatpush1.msra.mxu0 0.0
    %959 = vmatprep.subr.mxu0 0.0
    %960 = vmatpush1.msra.mxu0 0.0
    %961 = vmatprep.subr.mxu0 0.0
    %962 = vmatpush1.msra.mxu0 0.0
    %963 = vmatprep.subr.mxu0 0.0
    %964 = vmatpush1.msra.mxu0 0.0
    %965 = vmatprep.subr.mxu0 0.0
    %966 = vmatpush1.msra.mxu0 0.0
    %967 = vmatprep.subr.mxu0 0.0
    %968 = vmatpush1.msra.mxu0 0.0
    %969 = vmatprep.subr.mxu0 0.0
    %970 = vmatpush1.msra.mxu0 0.0
    %971 = vmatprep.subr.mxu0 0.0
    %972 = vmatpush1.msra.mxu0 0.0
    %973 = vmatprep.subr.mxu0 0.0
    %974 = vmatpush1.msra.mxu0 0.0
    %975 = vmatprep.subr.mxu0 0.0
    %976 = vmatpush1.msra.mxu0 0.0
    %977 = vmatprep.subr.mxu0 0.0
    %978 = vmatpush1.msra.mxu0 0.0
    %979 = vmatprep.subr.mxu0 0.0
    %980 = vmatpush1.msra.mxu0 0.0
    %981 = vmatprep.subr.mxu0 0.0
    %982 = vmatpush1.msra.mxu0 0.0
    %983 = vmatprep.subr.mxu0 0.0
    %984 = vmatpush1.msra.mxu0 0.0
    %985 = vmatprep.subr.mxu0 0.0
    %986 = vmatpush1.msra.mxu0 %v864
    %987 = vmatprep.subr.mxu0 0.0
    %988 = vmatpush2.msra.mxu0 0.0
    %989 = vmatprep.subr.mxu0 0.0
    %990 = vmatpush2.msra.mxu0 0.0
    %991 = vmatprep.subr.mxu0 0.0
    %992 = vmatpush2.msra.mxu0 0.0
    %993 = vmatprep.subr.mxu0 0.0
    %994 = vmatpush2.msra.mxu0 0.0
    %995 = vmatprep.subr.mxu0 0.0
    %996 = vmatpush2.msra.mxu0 0.0
    %997 = vmatprep.subr.mxu0 0.0
    %998 = vmatpush2.msra.mxu0 0.0
    %999 = vmatprep.subr.mxu0 0.0
    %1000 = vmatpush2.msra.mxu0 0.0
    %1001 = vmatprep.subr.mxu0 0.0
    %1002 = vmatpush2.msra.mxu0 0.0
    %1003 = vmatprep.subr.mxu0 0.0
    %1004 = vmatpush2.msra.mxu0 0.0
    %1005 = vmatprep.subr.mxu0 0.0
    %1006 = vmatpush2.msra.mxu0 0.0
    %1007 = vmatprep.subr.mxu0 0.0
    %1008 = vmatpush2.msra.mxu0 0.0
    %1009 = vmatprep.subr.mxu0 0.0
    %1010 = vmatpush2.msra.mxu0 0.0
    %1011 = vmatprep.subr.mxu0 0.0
    %1012 = vmatpush2.msra.mxu0 0.0
    %1013 = vmatprep.subr.mxu0 0.0
    %1014 = vmatpush2.msra.mxu0 0.0
    %1015 = vmatprep.subr.mxu0 0.0
    %1016 = vmatpush2.msra.mxu0 0.0
    %1017 = vmatprep.subr.mxu0 0.0
    %1018 = vmatpush2.msra.mxu0 0.0
    %1019 = vmatprep.mubr.f32.mxu0 0.0
    %1020 = vmatmul.mubr.f32.gmra.mxu0 %v953
    %v1021 = vpop.f32.mrf.mxu0
    %v1022 = vadd.f32 0.0, %v1021
    %v1023 = vpop.f32.mrf.mxu0
    %1024 = vdwg.mxu0
    %s1025 = scalar_lea.vmem %s4, 16
    %v1026 = vld [vmem:[%s1025] sm:$0xff]
    %v1027 = vld [vmem:[%s1025 + $0x8] sm:$0xff]
    %v1029 = vsel %vm453, %v1022, 0
    %1031 = vmatprep.subr.mxu0 0.0
    %1032 = vmatpush1.msra.mxu0 0.0
    %1033 = vmatprep.subr.mxu0 0.0
    %1034 = vmatpush1.msra.mxu0 0.0
    %1035 = vmatprep.subr.mxu0 0.0
    %1036 = vmatpush1.msra.mxu0 0.0
    %1037 = vmatprep.subr.mxu0 0.0
    %1038 = vmatpush1.msra.mxu0 0.0
    %1039 = vmatprep.subr.mxu0 0.0
    %1040 = vmatpush1.msra.mxu0 0.0
    %1041 = vmatprep.subr.mxu0 0.0
    %1042 = vmatpush1.msra.mxu0 0.0
    %1043 = vmatprep.subr.mxu0 0.0
    %1044 = vmatpush1.msra.mxu0 0.0
    %1045 = vmatprep.subr.mxu0 0.0
    %1046 = vmatpush1.msra.mxu0 0.0
    %1047 = vmatprep.subr.mxu0 0.0
    %1048 = vmatpush1.msra.mxu0 0.0
    %1049 = vmatprep.subr.mxu0 0.0
    %1050 = vmatpush1.msra.mxu0 0.0
    %1051 = vmatprep.subr.mxu0 0.0
    %1052 = vmatpush1.msra.mxu0 0.0
    %1053 = vmatprep.subr.mxu0 0.0
    %1054 = vmatpush1.msra.mxu0 0.0
    %1055 = vmatprep.subr.mxu0 0.0
    %1056 = vmatpush1.msra.mxu0 0.0
    %1057 = vmatprep.subr.mxu0 0.0
    %1058 = vmatpush1.msra.mxu0 0.0
    %1059 = vmatprep.subr.mxu0 0.0
    %1060 = vmatpush1.msra.mxu0 %v1027
    %1061 = vmatprep.subr.mxu0 0.0
    %1062 = vmatpush1.msra.mxu0 %v1026
    %1063 = vmatprep.subr.mxu0 0.0
    %1064 = vmatpush2.msra.mxu0 0.0
    %1065 = vmatprep.subr.mxu0 0.0
    %1066 = vmatpush2.msra.mxu0 0.0
    %1067 = vmatprep.subr.mxu0 0.0
    %1068 = vmatpush2.msra.mxu0 0.0
    %1069 = vmatprep.subr.mxu0 0.0
    %1070 = vmatpush2.msra.mxu0 0.0
    %1071 = vmatprep.subr.mxu0 0.0
    %1072 = vmatpush2.msra.mxu0 0.0
    %1073 = vmatprep.subr.mxu0 0.0
    %1074 = vmatpush2.msra.mxu0 0.0
    %1075 = vmatprep.subr.mxu0 0.0
    %1076 = vmatpush2.msra.mxu0 0.0
    %1077 = vmatprep.subr.mxu0 0.0
    %1078 = vmatpush2.msra.mxu0 0.0
    %1079 = vmatprep.subr.mxu0 0.0
    %1080 = vmatpush2.msra.mxu0 0.0
    %1081 = vmatprep.subr.mxu0 0.0
    %1082 = vmatpush2.msra.mxu0 0.0
    %1083 = vmatprep.subr.mxu0 0.0
    %1084 = vmatpush2.msra.mxu0 0.0
    %1085 = vmatprep.subr.mxu0 0.0
    %1086 = vmatpush2.msra.mxu0 0.0
    %1087 = vmatprep.subr.mxu0 0.0
    %1088 = vmatpush2.msra.mxu0 0.0
    %1089 = vmatprep.subr.mxu0 0.0
    %1090 = vmatpush2.msra.mxu0 0.0
    %1091 = vmatprep.subr.mxu0 0.0
    %1092 = vmatpush2.msra.mxu0 0.0
    %1093 = vmatprep.subr.mxu0 0.0
    %1094 = vmatpush2.msra.mxu0 0.0
    %1095 = vmatprep.mubr.f32.mxu0 0.0
    %1096 = vmatmul.mubr.f32.gmra.mxu0 %v1029
    %v1097 = vpop.f32.mrf.mxu0
    %v1098 = vadd.f32 0.0, %v1097
    %v1099 = vpop.f32.mrf.mxu0
    %1100 = vdwg.mxu0
    %v1102 = vsel %vm453, %v612, 0
    %1104 = vmatprep.subr.mxu0 0.0
    %1105 = vmatpush1.msra.mxu0 0.0
    %1106 = vmatprep.subr.mxu0 0.0
    %1107 = vmatpush1.msra.mxu0 0.0
    %1108 = vmatprep.subr.mxu0 0.0
    %1109 = vmatpush1.msra.mxu0 0.0
    %1110 = vmatprep.subr.mxu0 0.0
    %1111 = vmatpush1.msra.mxu0 0.0
    %1112 = vmatprep.subr.mxu0 0.0
    %1113 = vmatpush1.msra.mxu0 0.0
    %1114 = vmatprep.subr.mxu0 0.0
    %1115 = vmatpush1.msra.mxu0 0.0
    %1116 = vmatprep.subr.mxu0 0.0
    %1117 = vmatpush1.msra.mxu0 0.0
    %1118 = vmatprep.subr.mxu0 0.0
    %1119 = vmatpush1.msra.mxu0 0.0
    %1120 = vmatprep.subr.mxu0 0.0
    %1121 = vmatpush1.msra.mxu0 0.0
    %1122 = vmatprep.subr.mxu0 0.0
    %1123 = vmatpush1.msra.mxu0 0.0
    %1124 = vmatprep.subr.mxu0 0.0
    %1125 = vmatpush1.msra.mxu0 0.0
    %1126 = vmatprep.subr.mxu0 0.0
    %1127 = vmatpush1.msra.mxu0 0.0
    %1128 = vmatprep.subr.mxu0 0.0
    %1129 = vmatpush1.msra.mxu0 0.0
    %1130 = vmatprep.subr.mxu0 0.0
    %1131 = vmatpush1.msra.mxu0 0.0
    %1132 = vmatprep.subr.mxu0 0.0
    %1133 = vmatpush1.msra.mxu0 %v616
    %1134 = vmatprep.subr.mxu0 0.0
    %1135 = vmatpush1.msra.mxu0 %v615
    %1136 = vmatprep.subr.mxu0 0.0
    %1137 = vmatpush2.msra.mxu0 0.0
    %1138 = vmatprep.subr.mxu0 0.0
    %1139 = vmatpush2.msra.mxu0 0.0
    %1140 = vmatprep.subr.mxu0 0.0
    %1141 = vmatpush2.msra.mxu0 0.0
    %1142 = vmatprep.subr.mxu0 0.0
    %1143 = vmatpush2.msra.mxu0 0.0
    %1144 = vmatprep.subr.mxu0 0.0
    %1145 = vmatpush2.msra.mxu0 0.0
    %1146 = vmatprep.subr.mxu0 0.0
    %1147 = vmatpush2.msra.mxu0 0.0
    %1148 = vmatprep.subr.mxu0 0.0
    %1149 = vmatpush2.msra.mxu0 0.0
    %1150 = vmatprep.subr.mxu0 0.0
    %1151 = vmatpush2.msra.mxu0 0.0
    %1152 = vmatprep.subr.mxu0 0.0
    %1153 = vmatpush2.msra.mxu0 0.0
    %1154 = vmatprep.subr.mxu0 0.0
    %1155 = vmatpush2.msra.mxu0 0.0
    %1156 = vmatprep.subr.mxu0 0.0
    %1157 = vmatpush2.msra.mxu0 0.0
    %1158 = vmatprep.subr.mxu0 0.0
    %1159 = vmatpush2.msra.mxu0 0.0
    %1160 = vmatprep.subr.mxu0 0.0
    %1161 = vmatpush2.msra.mxu0 0.0
    %1162 = vmatprep.subr.mxu0 0.0
    %1163 = vmatpush2.msra.mxu0 0.0
    %1164 = vmatprep.subr.mxu0 0.0
    %1165 = vmatpush2.msra.mxu0 0.0
    %1166 = vmatprep.subr.mxu0 0.0
    %1167 = vmatpush2.msra.mxu0 0.0
    %1168 = vmatprep.mubr.f32.mxu0 0.0
    %1169 = vmatmul.mubr.f32.gmra.mxu0 %v1102
    %v1170 = vpop.f32.mrf.mxu0
    %v1171 = vadd.f32 %v1098, %v1170
    %v1172 = vpop.f32.mrf.mxu0
    %1173 = vdwg.mxu0
    %s1174 = scalar_lea.vmem [#allocation2], 24
    %v1175 = vld [vmem:[%s1174] sm:$0xff]
    %s1176 = scalar_lea.vmem [#allocation3], 24
    %v1177 = vld [vmem:[%s1176] sm:$0xff]
    %v1179 = vsel %vm453, %v858, 0
    %v1182 = vsel %vm453, %v1175, 0
    %1184 = vmatprep.subr.mxu0 0.0
    %1185 = vmatpush1.xpose.msra.mxu0 0.0
    %1186 = vmatprep.subr.mxu0 0.0
    %1187 = vmatpush1.xpose.msra.mxu0 0.0
    %1188 = vmatprep.subr.mxu0 0.0
    %1189 = vmatpush1.xpose.msra.mxu0 0.0
    %1190 = vmatprep.subr.mxu0 0.0
    %1191 = vmatpush1.xpose.msra.mxu0 0.0
    %1192 = vmatprep.subr.mxu0 0.0
    %1193 = vmatpush1.xpose.msra.mxu0 0.0
    %1194 = vmatprep.subr.mxu0 0.0
    %1195 = vmatpush1.xpose.msra.mxu0 0.0
    %1196 = vmatprep.subr.mxu0 0.0
    %1197 = vmatpush1.xpose.msra.mxu0 0.0
    %1198 = vmatprep.subr.mxu0 0.0
    %1199 = vmatpush1.xpose.msra.mxu0 0.0
    %1200 = vmatprep.subr.mxu0 0.0
    %1201 = vmatpush1.xpose.msra.mxu0 0.0
    %1202 = vmatprep.subr.mxu0 0.0
    %1203 = vmatpush1.xpose.msra.mxu0 0.0
    %1204 = vmatprep.subr.mxu0 0.0
    %1205 = vmatpush1.xpose.msra.mxu0 0.0
    %1206 = vmatprep.subr.mxu0 0.0
    %1207 = vmatpush1.xpose.msra.mxu0 0.0
    %1208 = vmatprep.subr.mxu0 0.0
    %1209 = vmatpush1.xpose.msra.mxu0 0.0
    %1210 = vmatprep.subr.mxu0 0.0
    %1211 = vmatpush1.xpose.msra.mxu0 0.0
    %1212 = vmatprep.subr.mxu0 0.0
    %1213 = vmatpush1.xpose.msra.mxu0 0.0
    %1214 = vmatprep.subr.mxu0 0.0
    %1215 = vmatpush1.xpose.msra.mxu0 %v1182
    %1216 = vmatprep.subr.mxu0 0.0
    %1217 = vmatpush2.xpose.msra.mxu0 0.0
    %1218 = vmatprep.subr.mxu0 0.0
    %1219 = vmatpush2.xpose.msra.mxu0 0.0
    %1220 = vmatprep.subr.mxu0 0.0
    %1221 = vmatpush2.xpose.msra.mxu0 0.0
    %1222 = vmatprep.subr.mxu0 0.0
    %1223 = vmatpush2.xpose.msra.mxu0 0.0
    %1224 = vmatprep.subr.mxu0 0.0
    %1225 = vmatpush2.xpose.msra.mxu0 0.0
    %1226 = vmatprep.subr.mxu0 0.0
    %1227 = vmatpush2.xpose.msra.mxu0 0.0
    %1228 = vmatprep.subr.mxu0 0.0
    %1229 = vmatpush2.xpose.msra.mxu0 0.0
    %1230 = vmatprep.subr.mxu0 0.0
    %1231 = vmatpush2.xpose.msra.mxu0 0.0
    %1232 = vmatprep.subr.mxu0 0.0
    %1233 = vmatpush2.xpose.msra.mxu0 0.0
    %1234 = vmatprep.subr.mxu0 0.0
    %1235 = vmatpush2.xpose.msra.mxu0 0.0
    %1236 = vmatprep.subr.mxu0 0.0
    %1237 = vmatpush2.xpose.msra.mxu0 0.0
    %1238 = vmatprep.subr.mxu0 0.0
    %1239 = vmatpush2.xpose.msra.mxu0 0.0
    %1240 = vmatprep.subr.mxu0 0.0
    %1241 = vmatpush2.xpose.msra.mxu0 0.0
    %1242 = vmatprep.subr.mxu0 0.0
    %1243 = vmatpush2.xpose.msra.mxu0 0.0
    %1244 = vmatprep.subr.mxu0 0.0
    %1245 = vmatpush2.xpose.msra.mxu0 0.0
    %1246 = vmatprep.subr.mxu0 0.0
    %1247 = vmatpush2.xpose.msra.mxu0 0.0
    %1248 = vmatprep.mubr.f32.mxu0 0.0
    %1249 = vmatmul.mubr.f32.gmra.mxu0 %v1179
    %v1250 = vpop.f32.mrf.mxu0
    %v1251 = vadd.f32 0.0, %v1250
    %v1252 = vpop.f32.mrf.mxu0
    %1253 = vdwg.mxu0
    %v1254 = vsel %vm530, %v1251, -inf
    %1255 = vmax.xlane.f32.xlu0 %v1254
    %v1256 = vpop.xlane.xlu0 %1255
    %v1257 = vsub.f32 %v1251, %v1256
    %v1258 = vmul.f32 %v1257, 1.442695
    %v1259 = vpow.pop %v1258
    %v1260 = vsel %vm530, %v1259, 0.0
    %1261 = vadd.xlane.f32.xlu0 %v1260
    %v1262 = vpop.xlane.xlu0 %1261
    %v1263 = vrcp.pop %v1262
    %v1264 = vmul.f32 %v1259, %v1263
    %v1266 = vsel %vm530, %v1264, 0
    %1268 = vmatprep.subr.mxu0 0.0
    %1269 = vmatpush1.msra.mxu0 0.0
    %1270 = vmatprep.subr.mxu0 0.0
    %1271 = vmatpush1.msra.mxu0 0.0
    %1272 = vmatprep.subr.mxu0 0.0
    %1273 = vmatpush1.msra.mxu0 0.0
    %1274 = vmatprep.subr.mxu0 0.0
    %1275 = vmatpush1.msra.mxu0 0.0
    %1276 = vmatprep.subr.mxu0 0.0
    %1277 = vmatpush1.msra.mxu0 0.0
    %1278 = vmatprep.subr.mxu0 0.0
    %1279 = vmatpush1.msra.mxu0 0.0
    %1280 = vmatprep.subr.mxu0 0.0
    %1281 = vmatpush1.msra.mxu0 0.0
    %1282 = vmatprep.subr.mxu0 0.0
    %1283 = vmatpush1.msra.mxu0 0.0
    %1284 = vmatprep.subr.mxu0 0.0
    %1285 = vmatpush1.msra.mxu0 0.0
    %1286 = vmatprep.subr.mxu0 0.0
    %1287 = vmatpush1.msra.mxu0 0.0
    %1288 = vmatprep.subr.mxu0 0.0
    %1289 = vmatpush1.msra.mxu0 0.0
    %1290 = vmatprep.subr.mxu0 0.0
    %1291 = vmatpush1.msra.mxu0 0.0
    %1292 = vmatprep.subr.mxu0 0.0
    %1293 = vmatpush1.msra.mxu0 0.0
    %1294 = vmatprep.subr.mxu0 0.0
    %1295 = vmatpush1.msra.mxu0 0.0
    %1296 = vmatprep.subr.mxu0 0.0
    %1297 = vmatpush1.msra.mxu0 0.0
    %1298 = vmatprep.subr.mxu0 0.0
    %1299 = vmatpush1.msra.mxu0 %v1177
    %1300 = vmatprep.subr.mxu0 0.0
    %1301 = vmatpush2.msra.mxu0 0.0
    %1302 = vmatprep.subr.mxu0 0.0
    %1303 = vmatpush2.msra.mxu0 0.0
    %1304 = vmatprep.subr.mxu0 0.0
    %1305 = vmatpush2.msra.mxu0 0.0
    %1306 = vmatprep.subr.mxu0 0.0
    %1307 = vmatpush2.msra.mxu0 0.0
    %1308 = vmatprep.subr.mxu0 0.0
    %1309 = vmatpush2.msra.mxu0 0.0
    %1310 = vmatprep.subr.mxu0 0.0
    %1311 = vmatpush2.msra.mxu0 0.0
    %1312 = vmatprep.subr.mxu0 0.0
    %1313 = vmatpush2.msra.mxu0 0.0
    %1314 = vmatprep.subr.mxu0 0.0
    %1315 = vmatpush2.msra.mxu0 0.0
    %1316 = vmatprep.subr.mxu0 0.0
    %1317 = vmatpush2.msra.mxu0 0.0
    %1318 = vmatprep.subr.mxu0 0.0
    %1319 = vmatpush2.msra.mxu0 0.0
    %1320 = vmatprep.subr.mxu0 0.0
    %1321 = vmatpush2.msra.mxu0 0.0
    %1322 = vmatprep.subr.mxu0 0.0
    %1323 = vmatpush2.msra.mxu0 0.0
    %1324 = vmatprep.subr.mxu0 0.0
    %1325 = vmatpush2.msra.mxu0 0.0
    %1326 = vmatprep.subr.mxu0 0.0
    %1327 = vmatpush2.msra.mxu0 0.0
    %1328 = vmatprep.subr.mxu0 0.0
    %1329 = vmatpush2.msra.mxu0 0.0
    %1330 = vmatprep.subr.mxu0 0.0
    %1331 = vmatpush2.msra.mxu0 0.0
    %1332 = vmatprep.mubr.f32.mxu0 0.0
    %1333 = vmatmul.mubr.f32.gmra.mxu0 %v1266
    %v1334 = vpop.f32.mrf.mxu0
    %v1335 = vadd.f32 0.0, %v1334
    %v1336 = vpop.f32.mrf.mxu0
    %1337 = vdwg.mxu0
    %v1339 = vsel %vm453, %v1335, 0
    %1341 = vmatprep.subr.mxu0 0.0
    %1342 = vmatpush1.msra.mxu0 0.0
    %1343 = vmatprep.subr.mxu0 0.0
    %1344 = vmatpush1.msra.mxu0 0.0
    %1345 = vmatprep.subr.mxu0 0.0
    %1346 = vmatpush1.msra.mxu0 0.0
    %1347 = vmatprep.subr.mxu0 0.0
    %1348 = vmatpush1.msra.mxu0 0.0
    %1349 = vmatprep.subr.mxu0 0.0
    %1350 = vmatpush1.msra.mxu0 0.0
    %1351 = vmatprep.subr.mxu0 0.0
    %1352 = vmatpush1.msra.mxu0 0.0
    %1353 = vmatprep.subr.mxu0 0.0
    %1354 = vmatpush1.msra.mxu0 0.0
    %1355 = vmatprep.subr.mxu0 0.0
    %1356 = vmatpush1.msra.mxu0 0.0
    %1357 = vmatprep.subr.mxu0 0.0
    %1358 = vmatpush1.msra.mxu0 0.0
    %1359 = vmatprep.subr.mxu0 0.0
    %1360 = vmatpush1.msra.mxu0 0.0
    %1361 = vmatprep.subr.mxu0 0.0
    %1362 = vmatpush1.msra.mxu0 0.0
    %1363 = vmatprep.subr.mxu0 0.0
    %1364 = vmatpush1.msra.mxu0 0.0
    %1365 = vmatprep.subr.mxu0 0.0
    %1366 = vmatpush1.msra.mxu0 0.0
    %1367 = vmatprep.subr.mxu0 0.0
    %1368 = vmatpush1.msra.mxu0 0.0
    %1369 = vmatprep.subr.mxu0 0.0
    %1370 = vmatpush1.msra.mxu0 %v1027
    %1371 = vmatprep.subr.mxu0 0.0
    %1372 = vmatpush1.msra.mxu0 %v1026
    %1373 = vmatprep.subr.mxu0 0.0
    %1374 = vmatpush2.msra.mxu0 0.0
    %1375 = vmatprep.subr.mxu0 0.0
    %1376 = vmatpush2.msra.mxu0 0.0
    %1377 = vmatprep.subr.mxu0 0.0
    %1378 = vmatpush2.msra.mxu0 0.0
    %1379 = vmatprep.subr.mxu0 0.0
    %1380 = vmatpush2.msra.mxu0 0.0
    %1381 = vmatprep.subr.mxu0 0.0
    %1382 = vmatpush2.msra.mxu0 0.0
    %1383 = vmatprep.subr.mxu0 0.0
    %1384 = vmatpush2.msra.mxu0 0.0
    %1385 = vmatprep.subr.mxu0 0.0
    %1386 = vmatpush2.msra.mxu0 0.0
    %1387 = vmatprep.subr.mxu0 0.0
    %1388 = vmatpush2.msra.mxu0 0.0
    %1389 = vmatprep.subr.mxu0 0.0
    %1390 = vmatpush2.msra.mxu0 0.0
    %1391 = vmatprep.subr.mxu0 0.0
    %1392 = vmatpush2.msra.mxu0 0.0
    %1393 = vmatprep.subr.mxu0 0.0
    %1394 = vmatpush2.msra.mxu0 0.0
    %1395 = vmatprep.subr.mxu0 0.0
    %1396 = vmatpush2.msra.mxu0 0.0
    %1397 = vmatprep.subr.mxu0 0.0
    %1398 = vmatpush2.msra.mxu0 0.0
    %1399 = vmatprep.subr.mxu0 0.0
    %1400 = vmatpush2.msra.mxu0 0.0
    %1401 = vmatprep.subr.mxu0 0.0
    %1402 = vmatpush2.msra.mxu0 0.0
    %1403 = vmatprep.subr.mxu0 0.0
    %1404 = vmatpush2.msra.mxu0 0.0
    %1405 = vmatprep.mubr.f32.mxu0 0.0
    %1406 = vmatmul.mubr.f32.gmra.mxu0 %v1339
    %v1407 = vpop.f32.mrf.mxu0
    %v1408 = vadd.f32 0.0, %v1407
    %v1409 = vpop.f32.mrf.mxu0
    %1410 = vdwg.mxu0
    %v1412 = vsel %vm453, %v778, 0
    %1414 = vmatprep.subr.mxu0 0.0
    %1415 = vmatpush1.msra.mxu0 0.0
    %1416 = vmatprep.subr.mxu0 0.0
    %1417 = vmatpush1.msra.mxu0 0.0
    %1418 = vmatprep.subr.mxu0 0.0
    %1419 = vmatpush1.msra.mxu0 0.0
    %1420 = vmatprep.subr.mxu0 0.0
    %1421 = vmatpush1.msra.mxu0 0.0
    %1422 = vmatprep.subr.mxu0 0.0
    %1423 = vmatpush1.msra.mxu0 0.0
    %1424 = vmatprep.subr.mxu0 0.0
    %1425 = vmatpush1.msra.mxu0 0.0
    %1426 = vmatprep.subr.mxu0 0.0
    %1427 = vmatpush1.msra.mxu0 0.0
    %1428 = vmatprep.subr.mxu0 0.0
    %1429 = vmatpush1.msra.mxu0 0.0
    %1430 = vmatprep.subr.mxu0 0.0
    %1431 = vmatpush1.msra.mxu0 0.0
    %1432 = vmatprep.subr.mxu0 0.0
    %1433 = vmatpush1.msra.mxu0 0.0
    %1434 = vmatprep.subr.mxu0 0.0
    %1435 = vmatpush1.msra.mxu0 0.0
    %1436 = vmatprep.subr.mxu0 0.0
    %1437 = vmatpush1.msra.mxu0 0.0
    %1438 = vmatprep.subr.mxu0 0.0
    %1439 = vmatpush1.msra.mxu0 0.0
    %1440 = vmatprep.subr.mxu0 0.0
    %1441 = vmatpush1.msra.mxu0 0.0
    %1442 = vmatprep.subr.mxu0 0.0
    %1443 = vmatpush1.msra.mxu0 %v616
    %1444 = vmatprep.subr.mxu0 0.0
    %1445 = vmatpush1.msra.mxu0 %v615
    %1446 = vmatprep.subr.mxu0 0.0
    %1447 = vmatpush2.msra.mxu0 0.0
    %1448 = vmatprep.subr.mxu0 0.0
    %1449 = vmatpush2.msra.mxu0 0.0
    %1450 = vmatprep.subr.mxu0 0.0
    %1451 = vmatpush2.msra.mxu0 0.0
    %1452 = vmatprep.subr.mxu0 0.0
    %1453 = vmatpush2.msra.mxu0 0.0
    %1454 = vmatprep.subr.mxu0 0.0
    %1455 = vmatpush2.msra.mxu0 0.0
    %1456 = vmatprep.subr.mxu0 0.0
    %1457 = vmatpush2.msra.mxu0 0.0
    %1458 = vmatprep.subr.mxu0 0.0
    %1459 = vmatpush2.msra.mxu0 0.0
    %1460 = vmatprep.subr.mxu0 0.0
    %1461 = vmatpush2.msra.mxu0 0.0
    %1462 = vmatprep.subr.mxu0 0.0
    %1463 = vmatpush2.msra.mxu0 0.0
    %1464 = vmatprep.subr.mxu0 0.0
    %1465 = vmatpush2.msra.mxu0 0.0
    %1466 = vmatprep.subr.mxu0 0.0
    %1467 = vmatpush2.msra.mxu0 0.0
    %1468 = vmatprep.subr.mxu0 0.0
    %1469 = vmatpush2.msra.mxu0 0.0
    %1470 = vmatprep.subr.mxu0 0.0
    %1471 = vmatpush2.msra.mxu0 0.0
    %1472 = vmatprep.subr.mxu0 0.0
    %1473 = vmatpush2.msra.mxu0 0.0
    %1474 = vmatprep.subr.mxu0 0.0
    %1475 = vmatpush2.msra.mxu0 0.0
    %1476 = vmatprep.subr.mxu0 0.0
    %1477 = vmatpush2.msra.mxu0 0.0
    %1478 = vmatprep.mubr.f32.mxu0 0.0
    %1479 = vmatmul.mubr.f32.gmra.mxu0 %v1412
    %v1480 = vpop.f32.mrf.mxu0
    %v1481 = vadd.f32 %v1408, %v1480
    %v1482 = vpop.f32.mrf.mxu0
    %1483 = vdwg.mxu0
    %1484 = vst.msk [vmem:[#allocation4] sm:$0xff] %vm369, %v1171
    %s1485 = scalar_lea.vmem [#allocation4], 8
    %1486 = vst.msk [vmem:[%s1485] sm:$0xff] %vm369, %v1481
    // Predicated region
    $region26: #{tpu_custom_call.1} parent=1 // pred_check
      _
    $region27: #{tpu_custom_call.1} parent=1 // pred_check_branch
      %1488 = sbr.rel (0) target = $region29
    $region28: #{tpu_custom_call.1} parent=1 // pred_region
      %s1490 = ssub.s32 256, 256
      %1491 = vsyncadd [#allocation5], %s1490
      %s1492 = sshll.u32 [#allocation4], 4
      %s1493 = int_to_ptr.vmem [resolvable:$true] %s1492
      %1498 = dma.vmem_to_hbm [thread:$0]  %s1493, 256, %s5, [#allocation5], 128, 128, 8
    $region29: #{tpu_custom_call.1} parent=1 // pred_fallthru
      _
    // Predicated region
    $region30: #{tpu_custom_call.1} parent=1 // pred_check
      _
    $region31: #{tpu_custom_call.1} parent=1 // pred_check_branch
      %1500 = sbr.rel (0) target = $region33
    $region32: #{tpu_custom_call.1} parent=1 // pred_region
      %1501 = dma.done [#allocation5], 256
    $region33: #{tpu_custom_call.1} parent=1 // pred_fallthru
      _
    %1502 = vsyncpa [#allocation5], 1

</llo_original>
